<compile_context>
chip_gen: v7x
topology: tpu7x:2x2x1
jax: 0.10.0
libtpu: 0.0.40
codegen_flags: <defaults>
</compile_context>

<pallas_src>
import jax
import jax.numpy as jnp
import numpy as np
from jax.experimental import pallas as pl
from jax.experimental.pallas import tpu as pltpu


def _round_up(x, m):
    return ((x + m - 1) // m) * m


# ----------------------------------------------------------------------------- kernel


def sagee_kernel(blk_start_ref, blk_count_ref,          # scalar prefetch (SMEM)
                 msg_ref, dst_ref, h_ref,               # streamed / tiled inputs
                 wmsg_ref, wah_ref, wan_ref, bm_ref, ba_ref,   # resident weights
                 o_ref,                                 # output tile [TN, DO]
                 acc_ref, self_ref):                    # VMEM f32 scratch [TN, DO] x2
    i = pl.program_id(0)            # node tile
    j = pl.program_id(1)            # edge block within this node tile's segment
    tn = o_ref.shape[0]
    te = dst_ref.shape[1]

    @pl.when(j == 0)
    def _init():
        acc_ref[...] = jnp.zeros_like(acc_ref)
        # Self-transform overlaps the edge-block stream instead of landing in finalize.
        self_ref[...] = jnp.dot(h_ref[...], wah_ref[...],
                                preferred_element_type=jnp.float32)

    # Only process edge blocks that actually belong to this node tile's (sorted) segment.
    @pl.when(j < blk_count_ref[i])
    def _accumulate():
        # Per-edge messages: relu([h_src ; e] @ W_msg + b_msg)  -- single bf16 MXU matmul.
        m = jnp.dot(msg_ref[...], wmsg_ref[...], preferred_element_type=jnp.float32)
        m = jnp.maximum(m + bm_ref[...], 0.0).astype(jnp.bfloat16)
        # In-tile scatter-add: one-hot of local destination rows (built in-kernel, no HBM S).
        local = dst_ref[...] - i * tn                                     # [1, TE] int32
        rows = jax.lax.broadcasted_iota(jnp.int32, (tn, te), 0)           # [TN, TE]
        onehot = jnp.where(rows == local, 1.0, 0.0).astype(jnp.bfloat16)  # out-of-tile -> 0
        acc_ref[...] += jnp.dot(onehot, m, preferred_element_type=jnp.float32)

    @pl.when(j == pl.num_programs(1) - 1)
    def _finalize():
        h_neigh = acc_ref[...].astype(jnp.bfloat16)
        out = (self_ref[...]
               + jnp.dot(h_neigh, wan_ref[...], preferred_element_type=jnp.float32)
               + ba_ref[...])
        o_ref[...] = jnp.maximum(out, 0.0)


# ----------------------------------------------------------------------------- wrapper


def sagee_forward(src, dst, nfeats, efeats, params, *, tn=128, te=256):
    """params: W_msg [ndim_in+edims, ndim_out], b_msg [ndim_out],
               W_apply [ndim_in+ndim_out, ndim_out], b_apply [ndim_out]
       (weights stored transposed vs. PyTorch, i.e. y = x @ W + b)."""
    N, ndim_in = nfeats.shape
    E, edims = efeats.shape
    ndim_out = params["b_msg"].shape[0]

    KM = _round_up(ndim_in + edims, 128)     # padded K for the message matmul
    KH = _round_up(ndim_in, 128)             # padded K for the "self" part of W_apply
    DO = _round_up(ndim_out, 128)            # padded output / h_neigh width (lane-dense)
    n_pad = _round_up(N, tn)
    e_pad = _round_up(max(E, 1), te)
    n_node_tiles = n_pad // tn
    n_edge_blocks = e_pad // te

    # ---------------- host-side graph preprocessing (sort edges by destination) -------
    src_np = np.asarray(src)
    dst_np = np.asarray(dst)
    order = np.argsort(dst_np, kind="stable")
    dst_sorted = np.full((e_pad,), n_pad, dtype=np.int32)      # sentinel dst for pad edges
    dst_sorted[:E] = dst_np[order]
    tiles = np.arange(n_node_tiles)
    tile_lo = np.searchsorted(dst_sorted[:E], tiles * tn, side="left")
    tile_hi = np.searchsorted(dst_sorted[:E], (tiles + 1) * tn, side="left")
    blk_start_raw = tile_lo // te
    blk_end = np.where(tile_hi > tile_lo, -(-tile_hi // te), blk_start_raw)
    blk_count = (blk_end - blk_start_raw).astype(np.int32)
    blk_start = np.minimum(blk_start_raw, n_edge_blocks - 1).astype(np.int32)
    # TODO(synk): max_blocks is derived from the concrete graph; use a static bound if jitting.
    max_blocks = max(int(blk_count.max()), 1)

    # ---------------- build padded, pre-concatenated operands -------------------------
    nf32 = np.asarray(nfeats, np.float32)
    ef32 = np.asarray(efeats, np.float32)
    msg_in = np.zeros((e_pad, KM), np.float32)                 # [h_src | e_feat | 0-pad]
    msg_in[:E, :ndim_in] = nf32[src_np[order]]
    msg_in[:E, ndim_in:ndim_in + edims] = ef32[order]

    nfeats_pad = np.zeros((n_pad, KH), np.float32)
    nfeats_pad[:N, :ndim_in] = nf32

    W_msg = np.asarray(params["W_msg"], np.float32)
    W_apply = np.asarray(params["W_apply"], np.float32)
    wmsg = np.zeros((KM, DO), np.float32); wmsg[:ndim_in + edims, :ndim_out] = W_msg
    wah = np.zeros((KH, DO), np.float32);  wah[:ndim_in, :ndim_out] = W_apply[:ndim_in]
    wan = np.zeros((DO, DO), np.float32);  wan[:ndim_out, :ndim_out] = W_apply[ndim_in:]
    bm = np.zeros((1, DO), np.float32);    bm[0, :ndim_out] = np.asarray(params["b_msg"])
    ba = np.zeros((1, DO), np.float32);    ba[0, :ndim_out] = np.asarray(params["b_apply"])

    # bf16 MXU operands, f32 biases / accumulator / output.
    msg_in = jnp.asarray(msg_in, jnp.bfloat16)
    nfeats_pad = jnp.asarray(nfeats_pad, jnp.bfloat16)
    wmsg = jnp.asarray(wmsg, jnp.bfloat16)
    wah = jnp.asarray(wah, jnp.bfloat16)
    wan = jnp.asarray(wan, jnp.bfloat16)
    bm = jnp.asarray(bm, jnp.float32)
    ba = jnp.asarray(ba, jnp.float32)
    dst2d = jnp.asarray(dst_sorted.reshape(1, e_pad), jnp.int32)
    blk_start_j = jnp.asarray(blk_start, jnp.int32)
    blk_count_j = jnp.asarray(blk_count, jnp.int32)

    # ---------------- grid / block specs ----------------------------------------------
    last_blk = n_edge_blocks - 1

    def _blk(i, j, bs, bc):
        # Clamp inside this tile's own segment: after the segment ends the block index stops
        # changing, so the auto-pipeline issues no redundant DMAs for masked-off iterations.
        jj = jnp.minimum(j, jnp.maximum(bc[i] - 1, 0))
        return jnp.minimum(bs[i] + jj, last_blk)

    def edge_rows(i, j, bs, bc):      # edge-block rows of msg_in
        return (_blk(i, j, bs, bc), 0)

    def edge_cols(i, j, bs, bc):      # edge-block columns of the sorted dst row-vector
        return (0, _blk(i, j, bs, bc))

    def node_tile(i, j, bs, bc):
        return (i, 0)

    def const(i, j, bs, bc):          # weights/biases stay resident in VMEM
        return (0, 0)

    grid_spec = pltpu.PrefetchScalarGridSpec(
        num_scalar_prefetch=2,
        grid=(n_node_tiles, max_blocks),
        in_specs=[
            pl.BlockSpec((te, KM), edge_rows),     # msg_in  (sorted by dst, zero-padded)
            pl.BlockSpec((1, te), edge_cols),      # dst ids (sorted, sentinel-padded)
            pl.BlockSpec((tn, KH), node_tile),     # nfeats tile
            pl.BlockSpec((KM, DO), const),         # W_msg
            pl.BlockSpec((KH, DO), const),         # W_apply (self part)
            pl.BlockSpec((DO, DO), const),         # W_apply (neighbor part)
            pl.BlockSpec((1, DO), const),          # b_msg
            pl.BlockSpec((1, DO), const),          # b_apply
        ],
        out_specs=pl.BlockSpec((tn, DO), node_tile),
        scratch_shapes=[pltpu.VMEM((tn, DO), jnp.float32),     # h_neigh accumulator
                        pltpu.VMEM((tn, DO), jnp.float32)],    # self-transform
    )

    out = pl.pallas_call(
        sagee_kernel,
        out_shape=jax.ShapeDtypeStruct((n_pad, DO), jnp.float32),
        grid_spec=grid_spec,
        compiler_params=pltpu.CompilerParams(
            dimension_semantics=("parallel", "arbitrary"),   # node tiles shard across TCs
            vmem_limit_bytes=32 * 1024 * 1024,               # safe on v5e/v6e/v7x
        ),
    )(blk_start_j, blk_count_j, msg_in, dst2d, nfeats_pad, wmsg, wah, wan, bm, ba)

    return out[:N, :ndim_out]


# ----------------------------------------------------------------------------- references


def sagee_reference_f32(src, dst, nfeats, efeats, params):
    N = nfeats.shape[0]
    msg_in = jnp.concatenate([nfeats[src], efeats], axis=1)
    m = jax.nn.relu(msg_in @ params["W_msg"] + params["b_msg"])
    h_neigh = jax.ops.segment_sum(m, dst, num_segments=N)
    apply_in = jnp.concatenate([nfeats, h_neigh], axis=1)
    return jax.nn.relu(apply_in @ params["W_apply"] + params["b_apply"])


def sagee_reference_bf16(src, dst, nfeats, efeats, params):
    """Same math, with operands quantized exactly as the kernel quantizes them."""
    N = nfeats.shape[0]
    rq = lambda x: x.astype(jnp.bfloat16).astype(jnp.float32)
    nf, ef = rq(nfeats), rq(efeats)
    Wm, Wa = rq(params["W_msg"]), rq(params["W_apply"])
    m = jax.nn.relu(jnp.concatenate([nf[src], ef], axis=1) @ Wm + params["b_msg"])
    m = rq(m)                                            # kernel feeds bf16 m to the scatter
    h_neigh = rq(jax.ops.segment_sum(m, dst, num_segments=N))
    return jax.nn.relu(jnp.concatenate([nf, h_neigh], axis=1) @ Wa + params["b_apply"])


def init_params(key, ndim_in, edims, ndim_out):
    k1, k2, k3, k4 = jax.random.split(key, 4)
    fan_msg = ndim_in + edims
    fan_apply = ndim_in + ndim_out
    lim_m = 1.0 / np.sqrt(fan_msg)
    lim_a = 1.0 / np.sqrt(fan_apply)
    return {
        "W_msg": jax.random.uniform(k1, (fan_msg, ndim_out), jnp.float32, -lim_m, lim_m),
        "b_msg": jax.random.uniform(k2, (ndim_out,), jnp.float32, -lim_m, lim_m),
        "W_apply": jax.random.uniform(k3, (fan_apply, ndim_out), jnp.float32, -lim_a, lim_a),
        "b_apply": jax.random.uniform(k4, (ndim_out,), jnp.float32, -lim_a, lim_a),
    }


if __name__ == "__main__":
    key = jax.random.PRNGKey(0)
    kp, kn, ke, ks, kd = jax.random.split(key, 5)

    N, E = 250, 500                       # small, but exercises multiple node/edge tiles
    ndim_in, edims, ndim_out = 32, 16, 32

    params = init_params(kp, ndim_in, edims, ndim_out)
    nfeats = jax.random.normal(kn, (N, ndim_in), jnp.float32)
    efeats = jax.random.normal(ke, (E, edims), jnp.float32)
    src = jax.random.randint(ks, (E,), 0, N)
    dst = jax.random.randint(kd, (E,), 0, N)

    out = sagee_forward(src, dst, nfeats, efeats, params)
    out = jax.block_until_ready(out)
    assert out.shape == (N, ndim_out)
    out_np = np.asarray(out)

    # Tight check against a reference that uses the same bf16 operand quantization.
    ref_q = np.asarray(sagee_reference_bf16(src, dst, nfeats, efeats, params))
    assert np.allclose(out_np, ref_q, atol=2e-2, rtol=2e-2), float(np.max(np.abs(out_np - ref_q)))

    # Loose check against the pure-f32 module semantics (bf16 MXU inputs => looser tolerance).
    ref_f = np.asarray(sagee_reference_f32(src, dst, nfeats, efeats, params))
    assert np.allclose(out_np, ref_f, atol=1.5e-1, rtol=1e-1), float(np.max(np.abs(out_np - ref_f)))

    print("KERNEL_OK")
</pallas_src>

<mosaic_0001>
module attributes {stable_mosaic.version = 11 : i64} {
  func.func @sagee_kernel(%arg0: i32, %arg1: i32, %arg2: memref<2xi32, #tpu.memory_space<smem>>, %arg3: memref<2xi32, #tpu.memory_space<smem>>, %arg4: memref<256x128xbf16, #tpu.memory_space<vmem>>, %arg5: memref<1x256xi32, #tpu.memory_space<vmem>>, %arg6: memref<128x128xbf16, #tpu.memory_space<vmem>>, %arg7: memref<128x128xbf16, #tpu.memory_space<vmem>>, %arg8: memref<128x128xbf16, #tpu.memory_space<vmem>>, %arg9: memref<128x128xbf16, #tpu.memory_space<vmem>>, %arg10: memref<1x128xf32, #tpu.memory_space<vmem>>, %arg11: memref<1x128xf32, #tpu.memory_space<vmem>>, %arg12: memref<128x128xf32, #tpu.memory_space<vmem>>, %arg13: memref<128x128xf32, #tpu.memory_space<vmem>>, %arg14: memref<128x128xf32, #tpu.memory_space<vmem>>) attributes {dimension_semantics = [#tpu.dimension_semantics<parallel>, #tpu.dimension_semantics<arbitrary>], iteration_bounds = array<i64: 2, 2>, scalar_prefetch = 2 : i64, scratch_operands = 2 : i64, tpu.core_type = #tpu.core_type<tc>, window_params = [{transform_indices = @transform_0, window_bounds = array<i64: 256, 128>}, {transform_indices = @transform_1, window_bounds = array<i64: 1, 256>}, {transform_indices = @transform_2, window_bounds = array<i64: 128, 128>}, {pipeline_mode = #tpu.pipeline_mode<synchronous>, transform_indices = @transform_3, window_bounds = array<i64: 128, 128>}, {pipeline_mode = #tpu.pipeline_mode<synchronous>, transform_indices = @transform_4, window_bounds = array<i64: 128, 128>}, {pipeline_mode = #tpu.pipeline_mode<synchronous>, transform_indices = @transform_5, window_bounds = array<i64: 128, 128>}, {pipeline_mode = #tpu.pipeline_mode<synchronous>, transform_indices = @transform_6, window_bounds = array<i64: 1, 128>}, {pipeline_mode = #tpu.pipeline_mode<synchronous>, transform_indices = @transform_7, window_bounds = array<i64: 1, 128>}, {transform_indices = @transform_8, window_bounds = array<i64: 128, 128>}]} {
    %c0_i32 = arith.constant 0 : i32
    %0 = arith.cmpi eq, %arg1, %c0_i32 : i32
    %1 = arith.extui %0 : i1 to i32
    %c0_i32_0 = arith.constant 0 : i32
    %2 = arith.cmpi ne, %1, %c0_i32_0 : i32
    scf.if %2 {
      %cst = arith.constant 0.000000e+00 : f32
      %11 = vector.broadcast %cst : f32 to vector<128x128xf32>
      %c0 = arith.constant 0 : index
      %c0_3 = arith.constant 0 : index
      %12 = vector.load %arg13[%c0, %c0_3] : memref<128x128xf32, #tpu.memory_space<vmem>>, vector<128x128xf32>
      tpu.vector_store %arg13[%c0, %c0_3], %11 {strides = array<i32>} : memref<128x128xf32, #tpu.memory_space<vmem>>, vector<128x128xf32>,
      %c0_4 = arith.constant 0 : index
      %c0_5 = arith.constant 0 : index
      %13 = vector.load %arg6[%c0_4, %c0_5] : memref<128x128xbf16, #tpu.memory_space<vmem>>, vector<128x128xbf16>
      %c0_6 = arith.constant 0 : index
      %c0_7 = arith.constant 0 : index
      %14 = vector.load %arg8[%c0_6, %c0_7] : memref<128x128xbf16, #tpu.memory_space<vmem>>, vector<128x128xbf16>
      %cst_8 = arith.constant dense<0.000000e+00> : vector<128x128xf32>
      %15 = tpu.matmul %13, %14, %cst_8 {dimension_numbers = #tpu.dot_dimension_numbers<[1], [0], [0], [1], [0, 0, 1, 1], [], []>} : vector<128x128xbf16>, vector<128x128xbf16>, vector<128x128xf32> -> vector<128x128xf32>
      %c0_9 = arith.constant 0 : index
      %c0_10 = arith.constant 0 : index
      %16 = vector.load %arg14[%c0_9, %c0_10] : memref<128x128xf32, #tpu.memory_space<vmem>>, vector<128x128xf32>
      tpu.vector_store %arg14[%c0_9, %c0_10], %15 {strides = array<i32>} : memref<128x128xf32, #tpu.memory_space<vmem>>, vector<128x128xf32>,
    } else {
    }
    %3 = arith.index_cast %arg0 : i32 to index
    %4 = memref.load %arg3[%3] : memref<2xi32, #tpu.memory_space<smem>>
    %5 = arith.cmpi slt, %arg1, %4 : i32
    %6 = arith.extui %5 : i1 to i32
    %c0_i32_1 = arith.constant 0 : i32
    %7 = arith.cmpi ne, %6, %c0_i32_1 : i32
    scf.if %7 {
      %c0 = arith.constant 0 : index
      %c0_3 = arith.constant 0 : index
      %11 = vector.load %arg4[%c0, %c0_3] : memref<256x128xbf16, #tpu.memory_space<vmem>>, vector<256x128xbf16>
      %c0_4 = arith.constant 0 : index
      %c0_5 = arith.constant 0 : index
      %12 = vector.load %arg7[%c0_4, %c0_5] : memref<128x128xbf16, #tpu.memory_space<vmem>>, vector<128x128xbf16>
      %cst = arith.constant dense<0.000000e+00> : vector<256x128xf32>
      %13 = tpu.matmul %11, %12, %cst {dimension_numbers = #tpu.dot_dimension_numbers<[1], [0], [0], [1], [0, 0, 1, 1], [], []>} : vector<256x128xbf16>, vector<128x128xbf16>, vector<256x128xf32> -> vector<256x128xf32>
      %c0_6 = arith.constant 0 : index
      %c0_7 = arith.constant 0 : index
      %14 = vector.load %arg10[%c0_6, %c0_7] : memref<1x128xf32, #tpu.memory_space<vmem>>, vector<1x128xf32>
      %15 = vector.broadcast %14 : vector<1x128xf32> to vector<256x128xf32>
      %16 = arith.addf %13, %15 : vector<256x128xf32>
      %cst_8 = arith.constant 0.000000e+00 : f32
      %17 = vector.broadcast %cst_8 : f32 to vector<256x128xf32>
      %18 = arith.maximumf %16, %17 : vector<256x128xf32>
      %19 = arith.truncf %18 : vector<256x128xf32> to vector<256x128xbf16>
      %c0_9 = arith.constant 0 : index
      %c0_10 = arith.constant 0 : index
      %20 = vector.load %arg5[%c0_9, %c0_10] : memref<1x256xi32, #tpu.memory_space<vmem>>, vector<1x256xi32>
      %c128_i32 = arith.constant 128 : i32
      %21 = arith.muli %arg0, %c128_i32 : i32
      %22 = vector.broadcast %21 : i32 to vector<1x256xi32>
      %23 = arith.subi %20, %22 : vector<1x256xi32>
      %24 = tpu.iota {dimensions = array<i32: 0>} : vector<128x256xi32>
      %25 = vector.broadcast %23 : vector<1x256xi32> to vector<128x256xi32>
      %26 = arith.cmpi eq, %24, %25 : vector<128x256xi32>
      %cst_11 = arith.constant 1.000000e+00 : f32
      %cst_12 = arith.constant 0.000000e+00 : f32
      %27 = vector.broadcast %cst_11 : f32 to vector<128x256xf32>
      %28 = vector.broadcast %cst_12 : f32 to vector<128x256xf32>
      %29 = arith.select %26, %27, %28 : vector<128x256xi1>, vector<128x256xf32>
      %30 = arith.truncf %29 : vector<128x256xf32> to vector<128x256xbf16>
      %c0_13 = arith.constant 0 : index
      %c0_14 = arith.constant 0 : index
      %31 = vector.load %arg13[%c0_13, %c0_14] : memref<128x128xf32, #tpu.memory_space<vmem>>, vector<128x128xf32>
      %cst_15 = arith.constant dense<0.000000e+00> : vector<128x128xf32>
      %32 = tpu.matmul %30, %19, %cst_15 {dimension_numbers = #tpu.dot_dimension_numbers<[1], [0], [0], [1], [0, 0, 1, 1], [], []>} : vector<128x256xbf16>, vector<256x128xbf16>, vector<128x128xf32> -> vector<128x128xf32>
      %33 = arith.addf %31, %32 : vector<128x128xf32>
      %c0_16 = arith.constant 0 : index
      %c0_17 = arith.constant 0 : index
      %34 = vector.load %arg13[%c0_16, %c0_17] : memref<128x128xf32, #tpu.memory_space<vmem>>, vector<128x128xf32>
      tpu.vector_store %arg13[%c0_16, %c0_17], %33 {strides = array<i32>} : memref<128x128xf32, #tpu.memory_space<vmem>>, vector<128x128xf32>,
    } else {
    }
    %c1_i32 = arith.constant 1 : i32
    %8 = arith.cmpi eq, %arg1, %c1_i32 : i32
    %9 = arith.extui %8 : i1 to i32
    %c0_i32_2 = arith.constant 0 : i32
    %10 = arith.cmpi ne, %9, %c0_i32_2 : i32
    scf.if %10 {
      %c0 = arith.constant 0 : index
      %c0_3 = arith.constant 0 : index
      %11 = vector.load %arg13[%c0, %c0_3] : memref<128x128xf32, #tpu.memory_space<vmem>>, vector<128x128xf32>
      %12 = arith.truncf %11 : vector<128x128xf32> to vector<128x128xbf16>
      %c0_4 = arith.constant 0 : index
      %c0_5 = arith.constant 0 : index
      %13 = vector.load %arg14[%c0_4, %c0_5] : memref<128x128xf32, #tpu.memory_space<vmem>>, vector<128x128xf32>
      %c0_6 = arith.constant 0 : index
      %c0_7 = arith.constant 0 : index
      %14 = vector.load %arg9[%c0_6, %c0_7] : memref<128x128xbf16, #tpu.memory_space<vmem>>, vector<128x128xbf16>
      %cst = arith.constant dense<0.000000e+00> : vector<128x128xf32>
      %15 = tpu.matmul %12, %14, %cst {dimension_numbers = #tpu.dot_dimension_numbers<[1], [0], [0], [1], [0, 0, 1, 1], [], []>} : vector<128x128xbf16>, vector<128x128xbf16>, vector<128x128xf32> -> vector<128x128xf32>
      %16 = arith.addf %13, %15 : vector<128x128xf32>
      %c0_8 = arith.constant 0 : index
      %c0_9 = arith.constant 0 : index
      %17 = vector.load %arg11[%c0_8, %c0_9] : memref<1x128xf32, #tpu.memory_space<vmem>>, vector<1x128xf32>
      %18 = vector.broadcast %17 : vector<1x128xf32> to vector<128x128xf32>
      %19 = arith.addf %16, %18 : vector<128x128xf32>
      %cst_10 = arith.constant 0.000000e+00 : f32
      %20 = vector.broadcast %cst_10 : f32 to vector<128x128xf32>
      %21 = arith.maximumf %19, %20 : vector<128x128xf32>
      %c0_11 = arith.constant 0 : index
      %c0_12 = arith.constant 0 : index
      %22 = vector.load %arg12[%c0_11, %c0_12] : memref<128x128xf32, #tpu.memory_space<vmem>>, vector<128x128xf32>
      tpu.vector_store %arg12[%c0_11, %c0_12], %21 {strides = array<i32>} : memref<128x128xf32, #tpu.memory_space<vmem>>, vector<128x128xf32>,
    } else {
    }
    return
  }
  func.func @transform_0(%arg0: i32, %arg1: i32, %arg2: memref<2xi32, #tpu.memory_space<smem>>, %arg3: memref<2xi32, #tpu.memory_space<smem>>) -> (i32, i32) {
    %0 = arith.index_cast %arg0 : i32 to index
    %1 = memref.load %arg3[%0] : memref<2xi32, #tpu.memory_space<smem>>
    %c1_i32 = arith.constant 1 : i32
    %2 = arith.subi %1, %c1_i32 : i32
    %c0_i32 = arith.constant 0 : i32
    %3 = arith.maxsi %2, %c0_i32 : i32
    %4 = arith.minsi %arg1, %3 : i32
    %5 = arith.index_cast %arg0 : i32 to index
    %6 = memref.load %arg2[%5] : memref<2xi32, #tpu.memory_space<smem>>
    %7 = arith.addi %6, %4 : i32
    %c1_i32_0 = arith.constant 1 : i32
    %8 = arith.minsi %7, %c1_i32_0 : i32
    %c0_i32_1 = arith.constant 0 : i32
    %c0_i32_2 = arith.constant 0 : i32
    return %8, %c0_i32_1 : i32, i32
  }
  func.func @transform_1(%arg0: i32, %arg1: i32, %arg2: memref<2xi32, #tpu.memory_space<smem>>, %arg3: memref<2xi32, #tpu.memory_space<smem>>) -> (i32, i32) {
    %0 = arith.index_cast %arg0 : i32 to index
    %1 = memref.load %arg3[%0] : memref<2xi32, #tpu.memory_space<smem>>
    %c1_i32 = arith.constant 1 : i32
    %2 = arith.subi %1, %c1_i32 : i32
    %c0_i32 = arith.constant 0 : i32
    %3 = arith.maxsi %2, %c0_i32 : i32
    %4 = arith.minsi %arg1, %3 : i32
    %5 = arith.index_cast %arg0 : i32 to index
    %6 = memref.load %arg2[%5] : memref<2xi32, #tpu.memory_space<smem>>
    %7 = arith.addi %6, %4 : i32
    %c1_i32_0 = arith.constant 1 : i32
    %8 = arith.minsi %7, %c1_i32_0 : i32
    %c0_i32_1 = arith.constant 0 : i32
    %c0_i32_2 = arith.constant 0 : i32
    return %c0_i32_1, %8 : i32, i32
  }
  func.func @transform_2(%arg0: i32, %arg1: i32, %arg2: memref<2xi32, #tpu.memory_space<smem>>, %arg3: memref<2xi32, #tpu.memory_space<smem>>) -> (i32, i32) {
    %c0_i32 = arith.constant 0 : i32
    %c0_i32_0 = arith.constant 0 : i32
    return %arg0, %c0_i32 : i32, i32
  }
  func.func @transform_3(%arg0: i32, %arg1: i32, %arg2: memref<2xi32, #tpu.memory_space<smem>>, %arg3: memref<2xi32, #tpu.memory_space<smem>>) -> (i32, i32) {
    %c0_i32 = arith.constant 0 : i32
    %c0_i32_0 = arith.constant 0 : i32
    %c0_i32_1 = arith.constant 0 : i32
    return %c0_i32, %c0_i32_0 : i32, i32
  }
  func.func @transform_4(%arg0: i32, %arg1: i32, %arg2: memref<2xi32, #tpu.memory_space<smem>>, %arg3: memref<2xi32, #tpu.memory_space<smem>>) -> (i32, i32) {
    %c0_i32 = arith.constant 0 : i32
    %c0_i32_0 = arith.constant 0 : i32
    %c0_i32_1 = arith.constant 0 : i32
    return %c0_i32, %c0_i32_0 : i32, i32
  }
  func.func @transform_5(%arg0: i32, %arg1: i32, %arg2: memref<2xi32, #tpu.memory_space<smem>>, %arg3: memref<2xi32, #tpu.memory_space<smem>>) -> (i32, i32) {
    %c0_i32 = arith.constant 0 : i32
    %c0_i32_0 = arith.constant 0 : i32
    %c0_i32_1 = arith.constant 0 : i32
    return %c0_i32, %c0_i32_0 : i32, i32
  }
  func.func @transform_6(%arg0: i32, %arg1: i32, %arg2: memref<2xi32, #tpu.memory_space<smem>>, %arg3: memref<2xi32, #tpu.memory_space<smem>>) -> (i32, i32) {
    %c0_i32 = arith.constant 0 : i32
    %c0_i32_0 = arith.constant 0 : i32
    %c0_i32_1 = arith.constant 0 : i32
    return %c0_i32, %c0_i32_0 : i32, i32
  }
  func.func @transform_7(%arg0: i32, %arg1: i32, %arg2: memref<2xi32, #tpu.memory_space<smem>>, %arg3: memref<2xi32, #tpu.memory_space<smem>>) -> (i32, i32) {
    %c0_i32 = arith.constant 0 : i32
    %c0_i32_0 = arith.constant 0 : i32
    %c0_i32_1 = arith.constant 0 : i32
    return %c0_i32, %c0_i32_0 : i32, i32
  }
  func.func @transform_8(%arg0: i32, %arg1: i32, %arg2: memref<2xi32, #tpu.memory_space<smem>>, %arg3: memref<2xi32, #tpu.memory_space<smem>>) -> (i32, i32) {
    %c0_i32 = arith.constant 0 : i32
    %c0_i32_0 = arith.constant 0 : i32
    return %arg0, %c0_i32 : i32, i32
  }
}

</mosaic_0001>

<llo_original>
// kernel: tpu_custom_call.1
$region0: #{tpu_custom_call.1}
  #allocation0 [shape = 'u32[]', space=smem, size = 0x4, offset = 0x4, fixed_abs, tag = 'smem constant byte address 0x4 - core index']
  #allocation1 [shape = 'u32[144,128]{1,0:T(1,128)}', space=vmem, size = 0x12000, scoped, tag = 'internal scratch']
  #allocation2 [shape = 'f32[128,128]{1,0:T(8,128)}', space=vmem, size = 0x10000, scoped, tag = 'scratch operand']
  #allocation3 [shape = 'f32[128,128]{1,0:T(8,128)}', space=vmem, size = 0x10000, scoped, tag = 'scratch operand']
  #allocation4 [shape = 's32[1]{0}', space=sflag, size = 0x4, scoped, tag = 'scoped memory for tpu_custom_call.1']
  #allocation5 [shape = 'u8[512]{0}', space=smem, size = 0x200, scoped, tag = 'prefetched SMEM operand 0']
  #allocation6 [shape = 'u8[512]{0}', space=smem, size = 0x200, scoped, tag = 'prefetched SMEM operand 1']
  %s0 = inlined_call_operand.hbm [shape: s32[2], index: 0, kind: input, shape index: {}]
  %s1 = inlined_call_operand.vmem [shape: s32[2], index: 1, kind: input, shape index: {}]
  %s2 = inlined_call_operand.hbm [shape: bf16[512,128], index: 2, kind: input, shape index: {}]
  %s3 = inlined_call_operand.vmem [shape: s32[1,512], index: 3, kind: input, shape index: {}]
  %s4 = inlined_call_operand.hbm [shape: bf16[256,128], index: 4, kind: input, shape index: {}]
  %s5 = inlined_call_operand.hbm [shape: bf16[128,128], index: 5, kind: input, shape index: {}]
  %s6 = inlined_call_operand.hbm [shape: bf16[128,128], index: 6, kind: input, shape index: {}]
  %s7 = inlined_call_operand.hbm [shape: bf16[128,128], index: 7, kind: input, shape index: {}]
  %s8 = inlined_call_operand.vmem [shape: f32[1,128], index: 8, kind: input, shape index: {}]
  %s9 = inlined_call_operand.vmem [shape: f32[1,128], index: 9, kind: input, shape index: {}]
  %s10 = inlined_call_operand.hbm [shape: f32[256,128], index: 10, kind: output, shape index: {}]
  %s11 = sld [smem:[#allocation0]]
  $region97: #{tpu_custom_call.1} parent=0
    _
  %s13 = ssub.s32 1, %s11
  %s14 = scalar_select 0, %s13, %s11
  %16 = dma.hbm_to_smem %s0, 16, [#allocation5], [#allocation4]
  %s17 = sshll.u32 %s1, 4
  %s18 = int_to_ptr.vmem [resolvable:$true] %s17
  %20 = dma.vmem_to_smem %s18, 16, [#allocation6], [#allocation4]
  %21 = dma.done [#allocation4], 32
  %22 = sfence
  $region1: #{tpu_custom_call.1} parent=0
    #allocation7 [shape = 'u8[131072]{0}', space=vmem, size = 0x20000, scoped, tag = 'input window, operand 2']
    #allocation8 [shape = 's32[2]{0}', space=sflag, size = 0x8, scoped, tag = 'scoped memory for tpu_custom_call.1']
    #allocation9 [shape = 's32[2]{0}', space=sflag, size = 0x8, scoped, tag = 'scoped memory for tpu_custom_call.1']
    #allocation10 [shape = 'u8[65536]{0}', space=vmem, size = 0x10000, scoped, tag = 'input window, operand 4']
    #allocation11 [shape = 's32[2]{0}', space=sflag, size = 0x8, scoped, tag = 'scoped memory for tpu_custom_call.1']
    #allocation12 [shape = 'u8[32768]{0}', space=vmem, size = 0x8000, scoped, tag = 'input window, operand 5, single buffered']
    #allocation13 [shape = 'u8[32768]{0}', space=vmem, size = 0x8000, scoped, tag = 'input window, operand 6, single buffered']
    #allocation14 [shape = 's32[1]{0}', space=sflag, size = 0x4, scoped, tag = 'scoped memory for tpu_custom_call.1']
    #allocation15 [shape = 'u8[32768]{0}', space=vmem, size = 0x8000, scoped, tag = 'input window, operand 7, single buffered']
    #allocation16 [shape = 'u8[131072]{0}', space=vmem, size = 0x20000, scoped, tag = 'output window, operand 0']
    %23 = vsyncpa [#allocation8], 0
    %s24 = scalar_lea.sflag [#allocation8], 1
    %25 = vsyncpa %s24, 0
    %26 = vsyncpa [#allocation11], 0
    %s27 = scalar_lea.sflag [#allocation11], 1
    %28 = vsyncpa %s27, 0
    %29 = vsyncpa [#allocation14], 0
    %30 = vsyncpa [#allocation9], 0
    %s31 = scalar_lea.sflag [#allocation9], 1
    %32 = vsyncpa %s31, 0
    loop: start=0, step=1, limit=6
    $region2: #{tpu_custom_call.1} parent=1 // loop_pre_header
      _
    $region3: #{tpu_custom_call.1} parent=1 // loop_header
      %s34 = sphi 0, %s38
      %p35 = scmp.ge.s32.totalorder %s34, 6
      %s41 = sphi 0, %s53
      %s42 = sphi 0, %s49
      %s43 = sphi 0, %s41
      %s44 = sphi 0, %s42
      %s45 = sphi 0, %s43
      %s46 = sphi 0, %s44
      %s76 = sphi 0, %s78
      %s79 = sphi 0, %s76
      %s80 = sphi 0, %s79
      %s96 = sphi 0, %s80
      %s122 = sphi 0, %s124
      %s125 = sphi 0, %s122
      %s126 = sphi 0, %s125
      %s142 = sphi 0, %s126
      %s148 = sphi 0, %s150
      %s151 = sphi 0, %s148
      %s152 = sphi 0, %s151
      %s168 = sphi 0, %s152
      %s172 = sphi 0, %s172
      %s174 = sphi 0, %s172
      %s175 = sphi 0, %s174
      %s189 = sphi 0, %s175
      %s193 = sphi 0, %s193
      %s195 = sphi 0, %s193
      %s196 = sphi 0, %s195
      %s210 = sphi 0, %s196
      %s214 = sphi 0, %s214
      %s216 = sphi 0, %s214
      %s217 = sphi 0, %s216
      %s231 = sphi 0, %s217
      %s235 = sphi 0, %s235
      %s237 = sphi 0, %s235
      %s238 = sphi 0, %s237
      %s252 = sphi 0, %s238
      %s256 = sphi 0, %s256
      %s258 = sphi 0, %s256
      %s259 = sphi 0, %s258
      %s273 = sphi 0, %s259
      %s279 = sphi 0, %s281
      %s282 = sphi 0, %s279
      %s283 = sphi 0, %s282
      %s299 = sphi 0, %s283
    $region4: #{tpu_custom_call.1} parent=1 // loop_header_branch
      %37 = sbr.rel (%p35) target = $region8
    $region5: #{tpu_custom_call.1} parent=1 // loop_body
      %s39 = ssub.s32 %s34, 1
      %s40 = ssub.s32 %s34, 2
      %s47 = sadd.s32 1, %s42
      %p48 = scmp.ge.s32.totalorder %s47, 2
      %s49 = scalar_select %p48, 0, %s47
      %s50 = sadd.s32 1, %s41
      %s51 = scalar_select %p48, %s50, %s41
      %p52 = scmp.ge.s32.totalorder %s51, 2
      %s53 = scalar_select %p52, 0, %s51
      %s54 = sld [smem:[#allocation6 + %s41]]
      %s55 = ssub.s32 %s54, 1
      %p56 = scmp.gt.s32.totalorder %s55, 0
      %s57 = scalar_select %p56, %s55, 0
      %p58 = scmp.lt.s32.totalorder %s42, %s57
      %s59 = scalar_select %p58, %s42, %s57
      %s60 = sld [smem:[#allocation5 + %s41]]
      %s61 = sadd.s32 %s60, %s59
      %p62 = scmp.lt.s32.totalorder %s61, 1
      %s63 = scalar_select %p62, %s61, 1
      %s64 = sld [smem:[#allocation6 + %s53]]
      %s65 = ssub.s32 %s64, 1
      %p66 = scmp.gt.s32.totalorder %s65, 0
      %s67 = scalar_select %p66, %s65, 0
      %p68 = scmp.lt.s32.totalorder %s49, %s67
      %s69 = scalar_select %p68, %s49, %s67
      %s70 = sld [smem:[#allocation5 + %s53]]
      %s71 = sadd.s32 %s70, %s69
      %p72 = scmp.lt.s32.totalorder %s71, 1
      %s73 = scalar_select %p72, %s71, 1
      %s74 = ssub.s32 %s63, %s73
      %p75 = scmp.eq.s32.totalorder %s74, 0
      %s77 = sadd.s32 %s76, 1
      %s78 = scalar_select %p75, %s76, %s77
      %p81 = pneg %p75
      %p82 = scmp.eq.s32.totalorder %s34, 3
      %p83 = por %p81, %p82
      %p84 = scmp.ne.s32.totalorder %s76, %s79
      %p85 = scmp.eq.s32.totalorder %s34, 0
      %p86 = por %p84, %p85
      %p87 = scmp.ne.s32.totalorder %s76, %s79
      %p88 = scmp.eq.s32.totalorder %s39, 3
      %p89 = por %p87, %p88
      %p90 = scmp.ne.s32.totalorder %s79, %s80
      %p91 = scmp.eq.s32.totalorder %s39, 0
      %p92 = por %p90, %p91
      %p93 = scmp.ne.s32.totalorder %s79, %s80
      %p94 = scmp.eq.s32.totalorder %s40, 3
      %p95 = por %p93, %p94
      %p97 = scmp.ne.s32.totalorder %s80, %s96
      %p98 = scmp.eq.s32.totalorder %s40, 0
      %p99 = por %p97, %p98
      %s100 = sld [smem:[#allocation6 + %s41]]
      %s101 = ssub.s32 %s100, 1
      %p102 = scmp.gt.s32.totalorder %s101, 0
      %s103 = scalar_select %p102, %s101, 0
      %p104 = scmp.lt.s32.totalorder %s42, %s103
      %s105 = scalar_select %p104, %s42, %s103
      %s106 = sld [smem:[#allocation5 + %s41]]
      %s107 = sadd.s32 %s106, %s105
      %p108 = scmp.lt.s32.totalorder %s107, 1
      %s109 = scalar_select %p108, %s107, 1
      %s110 = sld [smem:[#allocation6 + %s53]]
      %s111 = ssub.s32 %s110, 1
      %p112 = scmp.gt.s32.totalorder %s111, 0
      %s113 = scalar_select %p112, %s111, 0
      %p114 = scmp.lt.s32.totalorder %s49, %s113
      %s115 = scalar_select %p114, %s49, %s113
      %s116 = sld [smem:[#allocation5 + %s53]]
      %s117 = sadd.s32 %s116, %s115
      %p118 = scmp.lt.s32.totalorder %s117, 1
      %s119 = scalar_select %p118, %s117, 1
      %s120 = ssub.s32 %s109, %s119
      %p121 = scmp.eq.s32.totalorder %s120, 0
      %s123 = sadd.s32 %s122, 1
      %s124 = scalar_select %p121, %s122, %s123
      %p127 = pneg %p121
      %p128 = scmp.eq.s32.totalorder %s34, 3
      %p129 = por %p127, %p128
      %p130 = scmp.ne.s32.totalorder %s122, %s125
      %p131 = scmp.eq.s32.totalorder %s34, 0
      %p132 = por %p130, %p131
      %p133 = scmp.ne.s32.totalorder %s122, %s125
      %p134 = scmp.eq.s32.totalorder %s39, 3
      %p135 = por %p133, %p134
      %p136 = scmp.ne.s32.totalorder %s125, %s126
      %p137 = scmp.eq.s32.totalorder %s39, 0
      %p138 = por %p136, %p137
      %p139 = scmp.ne.s32.totalorder %s125, %s126
      %p140 = scmp.eq.s32.totalorder %s40, 3
      %p141 = por %p139, %p140
      %p143 = scmp.ne.s32.totalorder %s126, %s142
      %p144 = scmp.eq.s32.totalorder %s40, 0
      %p145 = por %p143, %p144
      %s146 = ssub.s32 %s41, %s53
      %p147 = scmp.eq.s32.totalorder %s146, 0
      %s149 = sadd.s32 %s148, 1
      %s150 = scalar_select %p147, %s148, %s149
      %p153 = pneg %p147
      %p154 = scmp.eq.s32.totalorder %s34, 3
      %p155 = por %p153, %p154
      %p156 = scmp.ne.s32.totalorder %s148, %s151
      %p157 = scmp.eq.s32.totalorder %s34, 0
      %p158 = por %p156, %p157
      %p159 = scmp.ne.s32.totalorder %s148, %s151
      %p160 = scmp.eq.s32.totalorder %s39, 3
      %p161 = por %p159, %p160
      %p162 = scmp.ne.s32.totalorder %s151, %s152
      %p163 = scmp.eq.s32.totalorder %s39, 0
      %p164 = por %p162, %p163
      %p165 = scmp.ne.s32.totalorder %s151, %s152
      %p166 = scmp.eq.s32.totalorder %s40, 3
      %p167 = por %p165, %p166
      %p169 = scmp.ne.s32.totalorder %s152, %s168
      %p170 = scmp.eq.s32.totalorder %s40, 0
      %p171 = por %p169, %p170
      %s173 = sadd.s32 %s172, 1
      %p176 = scmp.eq.s32.totalorder %s34, 3
      %p177 = scmp.ne.s32.totalorder %s172, %s174
      %p178 = scmp.eq.s32.totalorder %s34, 0
      %p179 = por %p177, %p178
      %p180 = scmp.ne.s32.totalorder %s172, %s174
      %p181 = scmp.eq.s32.totalorder %s39, 3
      %p182 = por %p180, %p181
      %p183 = scmp.ne.s32.totalorder %s174, %s175
      %p184 = scmp.eq.s32.totalorder %s39, 0
      %p185 = por %p183, %p184
      %p186 = scmp.ne.s32.totalorder %s174, %s175
      %p187 = scmp.eq.s32.totalorder %s40, 3
      %p188 = por %p186, %p187
      %p190 = scmp.ne.s32.totalorder %s175, %s189
      %p191 = scmp.eq.s32.totalorder %s40, 0
      %p192 = por %p190, %p191
      %s194 = sadd.s32 %s193, 1
      %p197 = scmp.eq.s32.totalorder %s34, 3
      %p198 = scmp.ne.s32.totalorder %s193, %s195
      %p199 = scmp.eq.s32.totalorder %s34, 0
      %p200 = por %p198, %p199
      %p201 = scmp.ne.s32.totalorder %s193, %s195
      %p202 = scmp.eq.s32.totalorder %s39, 3
      %p203 = por %p201, %p202
      %p204 = scmp.ne.s32.totalorder %s195, %s196
      %p205 = scmp.eq.s32.totalorder %s39, 0
      %p206 = por %p204, %p205
      %p207 = scmp.ne.s32.totalorder %s195, %s196
      %p208 = scmp.eq.s32.totalorder %s40, 3
      %p209 = por %p207, %p208
      %p211 = scmp.ne.s32.totalorder %s196, %s210
      %p212 = scmp.eq.s32.totalorder %s40, 0
      %p213 = por %p211, %p212
      %s215 = sadd.s32 %s214, 1
      %p218 = scmp.eq.s32.totalorder %s34, 3
      %p219 = scmp.ne.s32.totalorder %s214, %s216
      %p220 = scmp.eq.s32.totalorder %s34, 0
      %p221 = por %p219, %p220
      %p222 = scmp.ne.s32.totalorder %s214, %s216
      %p223 = scmp.eq.s32.totalorder %s39, 3
      %p224 = por %p222, %p223
      %p225 = scmp.ne.s32.totalorder %s216, %s217
      %p226 = scmp.eq.s32.totalorder %s39, 0
      %p227 = por %p225, %p226
      %p228 = scmp.ne.s32.totalorder %s216, %s217
      %p229 = scmp.eq.s32.totalorder %s40, 3
      %p230 = por %p228, %p229
      %p232 = scmp.ne.s32.totalorder %s217, %s231
      %p233 = scmp.eq.s32.totalorder %s40, 0
      %p234 = por %p232, %p233
      %s236 = sadd.s32 %s235, 1
      %p239 = scmp.eq.s32.totalorder %s34, 3
      %p240 = scmp.ne.s32.totalorder %s235, %s237
      %p241 = scmp.eq.s32.totalorder %s34, 0
      %p242 = por %p240, %p241
      %p243 = scmp.ne.s32.totalorder %s235, %s237
      %p244 = scmp.eq.s32.totalorder %s39, 3
      %p245 = por %p243, %p244
      %p246 = scmp.ne.s32.totalorder %s237, %s238
      %p247 = scmp.eq.s32.totalorder %s39, 0
      %p248 = por %p246, %p247
      %p249 = scmp.ne.s32.totalorder %s237, %s238
      %p250 = scmp.eq.s32.totalorder %s40, 3
      %p251 = por %p249, %p250
      %p253 = scmp.ne.s32.totalorder %s238, %s252
      %p254 = scmp.eq.s32.totalorder %s40, 0
      %p255 = por %p253, %p254
      %s257 = sadd.s32 %s256, 1
      %p260 = scmp.eq.s32.totalorder %s34, 3
      %p261 = scmp.ne.s32.totalorder %s256, %s258
      %p262 = scmp.eq.s32.totalorder %s34, 0
      %p263 = por %p261, %p262
      %p264 = scmp.ne.s32.totalorder %s256, %s258
      %p265 = scmp.eq.s32.totalorder %s39, 3
      %p266 = por %p264, %p265
      %p267 = scmp.ne.s32.totalorder %s258, %s259
      %p268 = scmp.eq.s32.totalorder %s39, 0
      %p269 = por %p267, %p268
      %p270 = scmp.ne.s32.totalorder %s258, %s259
      %p271 = scmp.eq.s32.totalorder %s40, 3
      %p272 = por %p270, %p271
      %p274 = scmp.ne.s32.totalorder %s259, %s273
      %p275 = scmp.eq.s32.totalorder %s40, 0
      %p276 = por %p274, %p275
      %s277 = ssub.s32 %s41, %s53
      %p278 = scmp.eq.s32.totalorder %s277, 0
      %s280 = sadd.s32 %s279, 1
      %s281 = scalar_select %p278, %s279, %s280
      %p284 = pneg %p278
      %p285 = scmp.eq.s32.totalorder %s34, 3
      %p286 = por %p284, %p285
      %p287 = scmp.ne.s32.totalorder %s279, %s282
      %p288 = scmp.eq.s32.totalorder %s34, 0
      %p289 = por %p287, %p288
      %p290 = scmp.ne.s32.totalorder %s279, %s282
      %p291 = scmp.eq.s32.totalorder %s39, 3
      %p292 = por %p290, %p291
      %p293 = scmp.ne.s32.totalorder %s282, %s283
      %p294 = scmp.eq.s32.totalorder %s39, 0
      %p295 = por %p293, %p294
      %p296 = scmp.ne.s32.totalorder %s282, %s283
      %p297 = scmp.eq.s32.totalorder %s40, 3
      %p298 = por %p296, %p297
      %p300 = scmp.ne.s32.totalorder %s283, %s299
      %p301 = scmp.eq.s32.totalorder %s40, 0
      %p302 = por %p300, %p301
      %p303 = scmp.le.s32.totalorder 1, %s34
      %p304 = scmp.lt.s32.totalorder %s34, 5
      %p305 = pnand %p303, %p304
      %p306 = pneg %p305
      // Predicated region
      $region9: #{tpu_custom_call.1} parent=5 // pred_check
        _
      $region10: #{tpu_custom_call.1} parent=5 // pred_check_branch
        %308 = sbr.rel (%p305) target = $region12
      $region11: #{tpu_custom_call.1} parent=5 // pred_region
        %s309 = ssub.s32 %s34, 1
        // Predicated region
        $region13: #{tpu_custom_call.1} parent=11 // pred_check
          %p310 = pneg %p185
        $region14: #{tpu_custom_call.1} parent=11 // pred_check_branch
          %312 = sbr.rel (%p310) target = $region16
        $region15: #{tpu_custom_call.1} parent=11 // pred_region
          %s314 = ssub.s32 1024, 1024
          %315 = vsyncadd [#allocation11], %s314
          %s316 = sshll.u32 [#allocation12], 4
          %s317 = int_to_ptr.vmem [resolvable:$true] %s316
          %322 = dma.hbm_to_vmem [thread:$0]  %s5, 1024, %s317, [#allocation11], 64, 64, 4
        $region16: #{tpu_custom_call.1} parent=11 // pred_fallthru
          _
        // Predicated region
        $region17: #{tpu_custom_call.1} parent=11 // pred_check
          %p323 = pneg %p206
        $region18: #{tpu_custom_call.1} parent=11 // pred_check_branch
          %325 = sbr.rel (%p323) target = $region20
        $region19: #{tpu_custom_call.1} parent=11 // pred_region
          %s327 = ssub.s32 1024, 1024
          %328 = vsyncadd [#allocation14], %s327
          %s329 = sshll.u32 [#allocation13], 4
          %s330 = int_to_ptr.vmem [resolvable:$true] %s329
          %335 = dma.hbm_to_vmem [thread:$0]  %s6, 1024, %s330, [#allocation14], 64, 64, 4
        $region20: #{tpu_custom_call.1} parent=11 // pred_fallthru
          _
        // Predicated region
        $region21: #{tpu_custom_call.1} parent=11 // pred_check
          %p336 = pneg %p227
        $region22: #{tpu_custom_call.1} parent=11 // pred_check_branch
          %338 = sbr.rel (%p336) target = $region24
        $region23: #{tpu_custom_call.1} parent=11 // pred_region
          %s340 = ssub.s32 1024, 1024
          %341 = vsyncadd [#allocation14], %s340
          %s342 = sshll.u32 [#allocation15], 4
          %s343 = int_to_ptr.vmem [resolvable:$true] %s342
          %348 = dma.hbm_to_vmem [thread:$0]  %s7, 1024, %s343, [#allocation14], 64, 64, 4
        $region24: #{tpu_custom_call.1} parent=11 // pred_fallthru
          _
        // Predicated region
        $region25: #{tpu_custom_call.1} parent=11 // pred_check
          %p349 = pneg %p248
        $region26: #{tpu_custom_call.1} parent=11 // pred_check_branch
          %351 = sbr.rel (%p349) target = $region28
        $region27: #{tpu_custom_call.1} parent=11 // pred_region
          _
        $region28: #{tpu_custom_call.1} parent=11 // pred_fallthru
          _
        // Predicated region
        $region29: #{tpu_custom_call.1} parent=11 // pred_check
          %p352 = pneg %p269
        $region30: #{tpu_custom_call.1} parent=11 // pred_check_branch
          %354 = sbr.rel (%p352) target = $region32
        $region31: #{tpu_custom_call.1} parent=11 // pred_region
          _
        $region32: #{tpu_custom_call.1} parent=11 // pred_fallthru
          _
      $region12: #{tpu_custom_call.1} parent=5 // pred_fallthru
        _
      %p355 = scmp.lt.s32.totalorder %s34, 4
      // Predicated region
      $region33: #{tpu_custom_call.1} parent=5 // pred_check
        %p356 = pneg %p355
      $region34: #{tpu_custom_call.1} parent=5 // pred_check_branch
        %358 = sbr.rel (%p356) target = $region36
      $region35: #{tpu_custom_call.1} parent=5 // pred_region
        // Predicated region
        $region37: #{tpu_custom_call.1} parent=35 // pred_check
          %p359 = pneg %p86
        $region38: #{tpu_custom_call.1} parent=35 // pred_check_branch
          %361 = sbr.rel (%p359) target = $region40
        $region39: #{tpu_custom_call.1} parent=35 // pred_region
          %s362 = sand.u32 %s76, 1
          %s363 = scalar_lea.sflag [#allocation8], %s362
          %s364 = sand.u32 %s76, 1
          %s365 = smul.addr %s364, 128
          %s366 = scalar_lea.vmem [#allocation7], %s365
          %s367 = sld [smem:[#allocation6 + %s41]]
          %s368 = ssub.s32 %s367, 1
          %p369 = scmp.gt.s32.totalorder %s368, 0
          %s370 = scalar_select %p369, %s368, 0
          %p371 = scmp.lt.s32.totalorder %s42, %s370
          %s372 = scalar_select %p371, %s42, %s370
          %s373 = sld [smem:[#allocation5 + %s41]]
          %s374 = sadd.s32 %s373, %s372
          %p375 = scmp.lt.s32.totalorder %s374, 1
          %s376 = scalar_select %p375, %s374, 1
          %s377 = smul.u32 32, %s376
          %s379 = ssub.s32 2048, 2048
          %380 = vsyncadd %s363, %s379
          %s381 = smul.addr %s377, 64
          %s382 = scalar_lea.hbm %s2, %s381
          %s383 = sshll.u32 %s366, 4
          %s384 = int_to_ptr.vmem [resolvable:$true] %s383
          %389 = dma.hbm_to_vmem [thread:$0]  %s382, 2048, %s384, %s363, 64, 64, 4
        $region40: #{tpu_custom_call.1} parent=35 // pred_fallthru
          _
        // Predicated region
        $region41: #{tpu_custom_call.1} parent=35 // pred_check
          %p390 = pneg %p132
        $region42: #{tpu_custom_call.1} parent=35 // pred_check_branch
          %392 = sbr.rel (%p390) target = $region44
        $region43: #{tpu_custom_call.1} parent=35 // pred_region
          %s393 = sld [smem:[#allocation6 + %s41]]
          %s394 = ssub.s32 %s393, 1
          %p395 = scmp.gt.s32.totalorder %s394, 0
          %s396 = scalar_select %p395, %s394, 0
          %p397 = scmp.lt.s32.totalorder %s42, %s396
          %s398 = scalar_select %p397, %s42, %s396
          %s399 = sld [smem:[#allocation5 + %s41]]
          %s400 = sadd.s32 %s399, %s398
          %p401 = scmp.lt.s32.totalorder %s400, 1
          %s402 = scalar_select %p401, %s400, 1
          %s403 = smul.u32 2, %s402
          %p404 = scmp.lt.s32.totalorder %s403, 3
          %s405 = scalar_select %p404, %s403, 3
          %s406 = scalar_lea.vmem %s3, %s405
          %s407 = sld [smem:[#allocation6 + %s41]]
          %s408 = ssub.s32 %s407, 1
          %p409 = scmp.gt.s32.totalorder %s408, 0
          %s410 = scalar_select %p409, %s408, 0
          %p411 = scmp.lt.s32.totalorder %s42, %s410
          %s412 = scalar_select %p411, %s42, %s410
          %s413 = sld [smem:[#allocation5 + %s41]]
          %s414 = sadd.s32 %s413, %s412
          %p415 = scmp.lt.s32.totalorder %s414, 1
          %s416 = scalar_select %p415, %s414, 1
          %s417 = smul.u32 2, %s416
        $region44: #{tpu_custom_call.1} parent=35 // pred_fallthru
          _
        // Predicated region
        $region45: #{tpu_custom_call.1} parent=35 // pred_check
          %p418 = pneg %p158
        $region46: #{tpu_custom_call.1} parent=35 // pred_check_branch
          %420 = sbr.rel (%p418) target = $region48
        $region47: #{tpu_custom_call.1} parent=35 // pred_region
          %s421 = sand.u32 %s34, 1
          %s422 = scalar_lea.sflag [#allocation11], %s421
          %s423 = sand.u32 %s148, 1
          %s424 = smul.addr %s423, 64
          %s425 = scalar_lea.vmem [#allocation10], %s424
          %s426 = smul.u32 16, %s41
          %s428 = ssub.s32 1024, 1024
          %429 = vsyncadd %s422, %s428
          %s430 = smul.addr %s426, 64
          %s431 = scalar_lea.hbm %s4, %s430
          %s432 = sshll.u32 %s425, 4
          %s433 = int_to_ptr.vmem [resolvable:$true] %s432
          %438 = dma.hbm_to_vmem [thread:$0]  %s431, 1024, %s433, %s422, 64, 64, 4
        $region48: #{tpu_custom_call.1} parent=35 // pred_fallthru
          _
      $region36: #{tpu_custom_call.1} parent=5 // pred_fallthru
        _
      %p439 = scmp.le.s32.totalorder 1, %s34
      %p440 = scmp.lt.s32.totalorder %s34, 5
      %p441 = pnand %p439, %p440
      %p442 = pneg %p441
      // Predicated region
      $region49: #{tpu_custom_call.1} parent=5 // pred_check
        _
      $region50: #{tpu_custom_call.1} parent=5 // pred_check_branch
        %444 = sbr.rel (%p441) target = $region52
      $region51: #{tpu_custom_call.1} parent=5 // pred_region
        %s445 = ssub.s32 %s34, 1
        %s446 = sand.u32 %s79, 1
        %s447 = scalar_lea.sflag [#allocation8], %s446
        %s448 = sand.u32 %s79, 1
        %s449 = smul.addr %s448, 128
        %s450 = scalar_lea.vmem [#allocation7], %s449
        // Predicated region
        $region53: #{tpu_custom_call.1} parent=51 // pred_check
          %p451 = pneg %p92
        $region54: #{tpu_custom_call.1} parent=51 // pred_check_branch
          %453 = sbr.rel (%p451) target = $region56
        $region55: #{tpu_custom_call.1} parent=51 // pred_region
          %454 = dma.done %s447, 2048
        $region56: #{tpu_custom_call.1} parent=51 // pred_fallthru
          _
        %s455 = sand.u32 %s39, 1
        %s456 = scalar_lea.sflag [#allocation11], %s455
        %s457 = sand.u32 %s151, 1
        %s458 = smul.addr %s457, 64
        %s459 = scalar_lea.vmem [#allocation10], %s458
        // Predicated region
        $region57: #{tpu_custom_call.1} parent=51 // pred_check
          %p460 = pneg %p164
        $region58: #{tpu_custom_call.1} parent=51 // pred_check_branch
          %462 = sbr.rel (%p460) target = $region60
        $region59: #{tpu_custom_call.1} parent=51 // pred_region
          %463 = dma.done %s456, 1024
        $region60: #{tpu_custom_call.1} parent=51 // pred_fallthru
          _
        // Predicated region
        $region61: #{tpu_custom_call.1} parent=51 // pred_check
          %p464 = pneg %p185
        $region62: #{tpu_custom_call.1} parent=51 // pred_check_branch
          %466 = sbr.rel (%p464) target = $region64
        $region63: #{tpu_custom_call.1} parent=51 // pred_region
          %467 = dma.done [#allocation11], 1024
        $region64: #{tpu_custom_call.1} parent=51 // pred_fallthru
          _
        // Predicated region
        $region65: #{tpu_custom_call.1} parent=51 // pred_check
          %p468 = pneg %p206
        $region66: #{tpu_custom_call.1} parent=51 // pred_check_branch
          %470 = sbr.rel (%p468) target = $region68
        $region67: #{tpu_custom_call.1} parent=51 // pred_region
          %471 = dma.done [#allocation14], 1024
        $region68: #{tpu_custom_call.1} parent=51 // pred_fallthru
          _
        // Predicated region
        $region69: #{tpu_custom_call.1} parent=51 // pred_check
          %p472 = pneg %p227
        $region70: #{tpu_custom_call.1} parent=51 // pred_check_branch
          %474 = sbr.rel (%p472) target = $region72
        $region71: #{tpu_custom_call.1} parent=51 // pred_region
          %475 = dma.done [#allocation14], 1024
        $region72: #{tpu_custom_call.1} parent=51 // pred_fallthru
          _
        %s476 = sand.u32 %s79, 1
        %s477 = scalar_lea.sflag [#allocation8], %s476
        %s478 = sand.u32 %s79, 1
        %s479 = smul.addr %s478, 128
        %s480 = scalar_lea.vmem [#allocation7], %s479
        %p481 = pneg %p92
        %p482 = pneg %p89
        %s483 = sld [smem:[#allocation6 + %s43]]
        %s484 = ssub.s32 %s483, 1
        %p485 = scmp.gt.s32.totalorder %s484, 0
        %s486 = scalar_select %p485, %s484, 0
        %p487 = scmp.lt.s32.totalorder %s44, %s486
        %s488 = scalar_select %p487, %s44, %s486
        %s489 = sld [smem:[#allocation5 + %s43]]
        %s490 = sadd.s32 %s489, %s488
        %p491 = scmp.lt.s32.totalorder %s490, 1
        %s492 = scalar_select %p491, %s490, 1
        %s493 = smul.u32 2, %s492
        %p494 = scmp.lt.s32.totalorder %s493, 3
        %s495 = scalar_select %p494, %s493, 3
        %s496 = scalar_lea.vmem %s3, %s495
        %p497 = pneg %p138
        %p498 = pneg %p135
        %s499 = sand.u32 %s39, 1
        %s500 = scalar_lea.sflag [#allocation11], %s499
        %s501 = sand.u32 %s151, 1
        %s502 = smul.addr %s501, 64
        %s503 = scalar_lea.vmem [#allocation10], %s502
        %p504 = pneg %p164
        %p505 = pneg %p161
        %p506 = pneg %p185
        %p507 = pneg %p182
        %p508 = pneg %p206
        %p509 = pneg %p203
        %p510 = pneg %p227
        %p511 = pneg %p224
        %p512 = pneg %p248
        %p513 = pneg %p245
        %p514 = pneg %p269
        %p515 = pneg %p266
        %p516 = pneg %p295
        %p517 = pneg %p292
        %s518 = sand.u32 %s282, 1
        %s519 = scalar_lea.sflag [#allocation9], %s518
        %s520 = sand.u32 %s282, 1
        %s521 = smul.addr %s520, 128
        %s522 = scalar_lea.vmem [#allocation16], %s521
        %s523 = sld [smem:[#allocation6 + %s43]]
        %s524 = ssub.s32 %s523, 1
        %p525 = scmp.gt.s32.totalorder %s524, 0
        %s526 = scalar_select %p525, %s524, 0
        %p527 = scmp.lt.s32.totalorder %s44, %s526
        %s528 = scalar_select %p527, %s44, %s526
        %s529 = sld [smem:[#allocation5 + %s43]]
        %s530 = sadd.s32 %s529, %s528
        %p531 = scmp.lt.s32.totalorder %s530, 1
        %s532 = scalar_select %p531, %s530, 1
        %s533 = smul.u32 32, %s532
        %s534 = sld [smem:[#allocation6 + %s43]]
        %s535 = ssub.s32 %s534, 1
        %p536 = scmp.gt.s32.totalorder %s535, 0
        %s537 = scalar_select %p536, %s535, 0
        %p538 = scmp.lt.s32.totalorder %s44, %s537
        %s539 = scalar_select %p538, %s44, %s537
        %s540 = sld [smem:[#allocation5 + %s43]]
        %s541 = sadd.s32 %s540, %s539
        %p542 = scmp.lt.s32.totalorder %s541, 1
        %s543 = scalar_select %p542, %s541, 1
        %s544 = smul.u32 2, %s543
        %p545 = scmp.lt.s32.totalorder %s544, 3
        %s546 = scalar_select %p545, %s544, 3
        %s547 = scalar_lea.vmem %s3, %s546
        %s548 = sld [smem:[#allocation6 + %s43]]
        %s549 = ssub.s32 %s548, 1
        %p550 = scmp.gt.s32.totalorder %s549, 0
        %s551 = scalar_select %p550, %s549, 0
        %p552 = scmp.lt.s32.totalorder %s44, %s551
        %s553 = scalar_select %p552, %s44, %s551
        %s554 = sld [smem:[#allocation5 + %s43]]
        %s555 = sadd.s32 %s554, %s553
        %p556 = scmp.lt.s32.totalorder %s555, 1
        %s557 = scalar_select %p556, %s555, 1
        %s558 = smul.u32 2, %s557
        %s559 = smul.u32 16, %s43
        %s560 = smul.u32 16, %s43
        %p562 = scmp.eq.s32.totalorder %s44, 0
        // Predicated region
        $region73: #{tpu_custom_call.1} parent=51 // pred_check
          %p563 = pneg %p562
        $region74: #{tpu_custom_call.1} parent=51 // pred_check_branch
          %565 = sbr.rel (%p563) target = $region76
        $region75: #{tpu_custom_call.1} parent=51 // pred_region
          %566 = vst [vmem:[#allocation2] sm:$0xff] 0.0
          %567 = vst [vmem:[#allocation2 + $0x8] sm:$0xff] 0.0
          %568 = vst [vmem:[#allocation2 + $0x10] sm:$0xff] 0.0
          %569 = vst [vmem:[#allocation2 + $0x18] sm:$0xff] 0.0
          %570 = vst [vmem:[#allocation2 + $0x20] sm:$0xff] 0.0
          %571 = vst [vmem:[#allocation2 + $0x28] sm:$0xff] 0.0
          %572 = vst [vmem:[#allocation2 + $0x30] sm:$0xff] 0.0
          %573 = vst [vmem:[#allocation2 + $0x38] sm:$0xff] 0.0
          %574 = vst [vmem:[#allocation2 + $0x40] sm:$0xff] 0.0
          %575 = vst [vmem:[#allocation2 + $0x48] sm:$0xff] 0.0
          %576 = vst [vmem:[#allocation2 + $0x50] sm:$0xff] 0.0
          %577 = vst [vmem:[#allocation2 + $0x58] sm:$0xff] 0.0
          %578 = vst [vmem:[#allocation2 + $0x60] sm:$0xff] 0.0
          %579 = vst [vmem:[#allocation2 + $0x68] sm:$0xff] 0.0
          %580 = vst [vmem:[#allocation2 + $0x70] sm:$0xff] 0.0
          %581 = vst [vmem:[#allocation2 + $0x78] sm:$0xff] 0.0
          %v582 = vld [vmem:[%s459] sm:$0xf]
          %v583 = vld [vmem:[%s459 + $0x4] sm:$0xf]
          %v584 = vld [vmem:[%s459 + $0x8] sm:$0xf]
          %v585 = vld [vmem:[%s459 + $0xc] sm:$0xf]
          %v586 = vld [vmem:[%s459 + $0x10] sm:$0xf]
          %v587 = vld [vmem:[%s459 + $0x14] sm:$0xf]
          %v588 = vld [vmem:[%s459 + $0x18] sm:$0xf]
          %v589 = vld [vmem:[%s459 + $0x1c] sm:$0xf]
          %v590 = vld [vmem:[%s459 + $0x20] sm:$0xf]
          %v591 = vld [vmem:[%s459 + $0x24] sm:$0xf]
          %v592 = vld [vmem:[%s459 + $0x28] sm:$0xf]
          %v593 = vld [vmem:[%s459 + $0x2c] sm:$0xf]
          %v594 = vld [vmem:[%s459 + $0x30] sm:$0xf]
          %v595 = vld [vmem:[%s459 + $0x34] sm:$0xf]
          %v596 = vld [vmem:[%s459 + $0x38] sm:$0xf]
          %v597 = vld [vmem:[%s459 + $0x3c] sm:$0xf]
          %v598 = vld [vmem:[#allocation13] sm:$0xf]
          %v599 = vld [vmem:[#allocation13 + $0x4] sm:$0xf]
          %v600 = vld [vmem:[#allocation13 + $0x8] sm:$0xf]
          %v601 = vld [vmem:[#allocation13 + $0xc] sm:$0xf]
          %v602 = vld [vmem:[#allocation13 + $0x10] sm:$0xf]
          %v603 = vld [vmem:[#allocation13 + $0x14] sm:$0xf]
          %v604 = vld [vmem:[#allocation13 + $0x18] sm:$0xf]
          %v605 = vld [vmem:[#allocation13 + $0x1c] sm:$0xf]
          %v606 = vld [vmem:[#allocation13 + $0x20] sm:$0xf]
          %v607 = vld [vmem:[#allocation13 + $0x24] sm:$0xf]
          %v608 = vld [vmem:[#allocation13 + $0x28] sm:$0xf]
          %v609 = vld [vmem:[#allocation13 + $0x2c] sm:$0xf]
          %v610 = vld [vmem:[#allocation13 + $0x30] sm:$0xf]
          %v611 = vld [vmem:[#allocation13 + $0x34] sm:$0xf]
          %v612 = vld [vmem:[#allocation13 + $0x38] sm:$0xf]
          %v613 = vld [vmem:[#allocation13 + $0x3c] sm:$0xf]
          %v630 = vunpack.c.l.b16 %v582
          %v631 = vunpack.c.l.b16 %v583
          %v632 = vunpack.c.l.b16 %v584
          %v633 = vunpack.c.l.b16 %v585
          %v634 = vunpack.c.l.b16 %v586
          %v635 = vunpack.c.l.b16 %v587
          %v636 = vunpack.c.l.b16 %v588
          %v637 = vunpack.c.l.b16 %v589
          %v638 = vunpack.c.l.b16 %v590
          %v639 = vunpack.c.l.b16 %v591
          %v640 = vunpack.c.l.b16 %v592
          %v641 = vunpack.c.l.b16 %v593
          %v642 = vunpack.c.l.b16 %v594
          %v643 = vunpack.c.l.b16 %v595
          %v644 = vunpack.c.l.b16 %v596
          %v645 = vunpack.c.l.b16 %v597
          %v646 = vpack.c.b16 %v631, %v630
          %v647 = vpack.c.b16 %v633, %v632
          %v648 = vpack.c.b16 %v635, %v634
          %v649 = vpack.c.b16 %v637, %v636
          %v650 = vpack.c.b16 %v639, %v638
          %v651 = vpack.c.b16 %v641, %v640
          %v652 = vpack.c.b16 %v643, %v642
          %v653 = vpack.c.b16 %v645, %v644
          %v678 = vunpack.c.l.b16 %v598
          %v679 = vunpack.c.l.b16 %v599
          %v680 = vunpack.c.l.b16 %v600
          %v681 = vunpack.c.l.b16 %v601
          %v682 = vunpack.c.l.b16 %v602
          %v683 = vunpack.c.l.b16 %v603
          %v684 = vunpack.c.l.b16 %v604
          %v685 = vunpack.c.l.b16 %v605
          %v686 = vunpack.c.l.b16 %v606
          %v687 = vunpack.c.l.b16 %v607
          %v688 = vunpack.c.l.b16 %v608
          %v689 = vunpack.c.l.b16 %v609
          %v690 = vunpack.c.l.b16 %v610
          %v691 = vunpack.c.l.b16 %v611
          %v692 = vunpack.c.l.b16 %v612
          %v693 = vunpack.c.l.b16 %v613
          %v694 = vpack.c.b16 %v679, %v678
          %v695 = vpack.c.b16 %v681, %v680
          %v696 = vpack.c.b16 %v683, %v682
          %v697 = vpack.c.b16 %v685, %v684
          %v698 = vpack.c.b16 %v687, %v686
          %v699 = vpack.c.b16 %v689, %v688
          %v700 = vpack.c.b16 %v691, %v690
          %v701 = vpack.c.b16 %v693, %v692
          %710 = vmatprep.subr.bf16.mxu0 0
          %711 = vmatpush1.bf16.msra.mxu0 %v694
          %712 = vmatprep.subr.bf16.mxu0 0
          %713 = vmatpush1.bf16.msra.mxu0 %v695
          %714 = vmatprep.subr.bf16.mxu0 0
          %715 = vmatpush1.bf16.msra.mxu0 %v696
          %716 = vmatprep.subr.bf16.mxu0 0
          %717 = vmatpush1.bf16.msra.mxu0 %v697
          %718 = vmatprep.subr.bf16.mxu0 0
          %719 = vmatpush1.bf16.msra.mxu0 %v698
          %720 = vmatprep.subr.bf16.mxu0 0
          %721 = vmatpush1.bf16.msra.mxu0 %v699
          %722 = vmatprep.subr.bf16.mxu0 0
          %723 = vmatpush1.bf16.msra.mxu0 %v700
          %724 = vmatprep.subr.bf16.mxu0 0
          %725 = vmatpush1.bf16.msra.mxu0 %v701
          %726 = vmatprep.subr.bf16.mxu0 0
          %727 = vmatpush1.bf16.msra.mxu0 0
          %728 = vmatprep.subr.bf16.mxu0 0
          %729 = vmatpush1.bf16.msra.mxu0 0
          %730 = vmatprep.subr.bf16.mxu0 0
          %731 = vmatpush1.bf16.msra.mxu0 0
          %732 = vmatprep.subr.bf16.mxu0 0
          %733 = vmatpush1.bf16.msra.mxu0 0
          %734 = vmatprep.subr.bf16.mxu0 0
          %735 = vmatpush1.bf16.msra.mxu0 0
          %736 = vmatprep.subr.bf16.mxu0 0
          %737 = vmatpush1.bf16.msra.mxu0 0
          %738 = vmatprep.subr.bf16.mxu0 0
          %739 = vmatpush1.bf16.msra.mxu0 0
          %740 = vmatprep.subr.bf16.mxu0 0
          %741 = vmatpush1.bf16.msra.mxu0 0
          %742 = vmatprep.mubr.bf16.mxu0 0
          %743 = vmatmul.mubr.bf16.gmra.mrb[0].mxu0 %v646
          %v744 = vpop.f32.mrb[0].mxu0
          %v745 = vadd.f32 0.0, %v744
          %v746 = vpop.f32.mrb[0].mxu0
          %v747 = vpop.f32.mrb[0].mxu0
          %v748 = vadd.f32 0.0, %v747
          %v749 = vpop.f32.mrb[0].mxu0
          %750 = vmatprep.mubr.bf16.mxu0 0
          %751 = vmatmul.mubr.bf16.gmra.mrb[0].mxu0 %v647
          %v752 = vpop.f32.mrb[0].mxu0
          %v753 = vadd.f32 0.0, %v752
          %v754 = vpop.f32.mrb[0].mxu0
          %v755 = vpop.f32.mrb[0].mxu0
          %v756 = vadd.f32 0.0, %v755
          %v757 = vpop.f32.mrb[0].mxu0
          %758 = vmatprep.mubr.bf16.mxu0 0
          %759 = vmatmul.mubr.bf16.gmra.mrb[0].mxu0 %v648
          %v760 = vpop.f32.mrb[0].mxu0
          %v761 = vadd.f32 0.0, %v760
          %v762 = vpop.f32.mrb[0].mxu0
          %v763 = vpop.f32.mrb[0].mxu0
          %v764 = vadd.f32 0.0, %v763
          %v765 = vpop.f32.mrb[0].mxu0
          %766 = vmatprep.mubr.bf16.mxu0 0
          %767 = vmatmul.mubr.bf16.gmra.mrb[0].mxu0 %v649
          %v768 = vpop.f32.mrb[0].mxu0
          %v769 = vadd.f32 0.0, %v768
          %v770 = vpop.f32.mrb[0].mxu0
          %v771 = vpop.f32.mrb[0].mxu0
          %v772 = vadd.f32 0.0, %v771
          %v773 = vpop.f32.mrb[0].mxu0
          %774 = vmatprep.mubr.bf16.mxu0 0
          %775 = vmatmul.mubr.bf16.gmra.mrb[0].mxu0 %v650
          %v776 = vpop.f32.mrb[0].mxu0
          %v777 = vadd.f32 0.0, %v776
          %v778 = vpop.f32.mrb[0].mxu0
          %v779 = vpop.f32.mrb[0].mxu0
          %v780 = vadd.f32 0.0, %v779
          %v781 = vpop.f32.mrb[0].mxu0
          %782 = vmatprep.mubr.bf16.mxu0 0
          %783 = vmatmul.mubr.bf16.gmra.mrb[0].mxu0 %v651
          %v784 = vpop.f32.mrb[0].mxu0
          %v785 = vadd.f32 0.0, %v784
          %v786 = vpop.f32.mrb[0].mxu0
          %v787 = vpop.f32.mrb[0].mxu0
          %v788 = vadd.f32 0.0, %v787
          %v789 = vpop.f32.mrb[0].mxu0
          %790 = vmatprep.mubr.bf16.mxu0 0
          %791 = vmatmul.mubr.bf16.gmra.mrb[0].mxu0 %v652
          %v792 = vpop.f32.mrb[0].mxu0
          %v793 = vadd.f32 0.0, %v792
          %v794 = vpop.f32.mrb[0].mxu0
          %v795 = vpop.f32.mrb[0].mxu0
          %v796 = vadd.f32 0.0, %v795
          %v797 = vpop.f32.mrb[0].mxu0
          %798 = vmatprep.mubr.bf16.mxu0 0
          %799 = vmatmul.mubr.bf16.gmra.mrb[0].mxu0 %v653
          %v800 = vpop.f32.mrb[0].mxu0
          %v801 = vadd.f32 0.0, %v800
          %v802 = vpop.f32.mrb[0].mxu0
          %v803 = vpop.f32.mrb[0].mxu0
          %v804 = vadd.f32 0.0, %v803
          %v805 = vpop.f32.mrb[0].mxu0
          %806 = vdwg.mxu0
          %807 = vst [vmem:[#allocation3] sm:$0xff] %v745
          %808 = vst [vmem:[#allocation3 + $0x8] sm:$0xff] %v748
          %809 = vst [vmem:[#allocation3 + $0x10] sm:$0xff] %v753
          %810 = vst [vmem:[#allocation3 + $0x18] sm:$0xff] %v756
          %811 = vst [vmem:[#allocation3 + $0x20] sm:$0xff] %v761
          %812 = vst [vmem:[#allocation3 + $0x28] sm:$0xff] %v764
          %813 = vst [vmem:[#allocation3 + $0x30] sm:$0xff] %v769
          %814 = vst [vmem:[#allocation3 + $0x38] sm:$0xff] %v772
          %815 = vst [vmem:[#allocation3 + $0x40] sm:$0xff] %v777
          %816 = vst [vmem:[#allocation3 + $0x48] sm:$0xff] %v780
          %817 = vst [vmem:[#allocation3 + $0x50] sm:$0xff] %v785
          %818 = vst [vmem:[#allocation3 + $0x58] sm:$0xff] %v788
          %819 = vst [vmem:[#allocation3 + $0x60] sm:$0xff] %v793
          %820 = vst [vmem:[#allocation3 + $0x68] sm:$0xff] %v796
          %821 = vst [vmem:[#allocation3 + $0x70] sm:$0xff] %v801
          %822 = vst [vmem:[#allocation3 + $0x78] sm:$0xff] %v804
        $region76: #{tpu_custom_call.1} parent=51 // pred_fallthru
          _
        %s823 = sld [smem:[#allocation6 + %s43]]
        %p824 = scmp.lt.s32.totalorder %s44, %s823
        // Predicated region
        $region77: #{tpu_custom_call.1} parent=51 // pred_check
          %p825 = pneg %p824
        $region78: #{tpu_custom_call.1} parent=51 // pred_check_branch
          %827 = sbr.rel (%p825) target = $region80
        $region79: #{tpu_custom_call.1} parent=51 // pred_region
          %v828 = vld [vmem:[%s450] sm:$0xf]
          %v829 = vld [vmem:[%s450 + $0x4] sm:$0xf]
          %v830 = vld [vmem:[%s450 + $0x8] sm:$0xf]
          %v831 = vld [vmem:[%s450 + $0xc] sm:$0xf]
          %v832 = vld [vmem:[%s450 + $0x10] sm:$0xf]
          %v833 = vld [vmem:[%s450 + $0x14] sm:$0xf]
          %v834 = vld [vmem:[%s450 + $0x18] sm:$0xf]
          %v835 = vld [vmem:[%s450 + $0x1c] sm:$0xf]
          %v836 = vld [vmem:[%s450 + $0x20] sm:$0xf]
          %v837 = vld [vmem:[%s450 + $0x24] sm:$0xf]
          %v838 = vld [vmem:[%s450 + $0x28] sm:$0xf]
          %v839 = vld [vmem:[%s450 + $0x2c] sm:$0xf]
          %v840 = vld [vmem:[%s450 + $0x30] sm:$0xf]
          %v841 = vld [vmem:[%s450 + $0x34] sm:$0xf]
          %v842 = vld [vmem:[%s450 + $0x38] sm:$0xf]
          %v843 = vld [vmem:[%s450 + $0x3c] sm:$0xf]
          %v844 = vld [vmem:[%s450 + $0x40] sm:$0xf]
          %v845 = vld [vmem:[%s450 + $0x44] sm:$0xf]
          %v846 = vld [vmem:[%s450 + $0x48] sm:$0xf]
          %v847 = vld [vmem:[%s450 + $0x4c] sm:$0xf]
          %v848 = vld [vmem:[%s450 + $0x50] sm:$0xf]
          %v849 = vld [vmem:[%s450 + $0x54] sm:$0xf]
          %v850 = vld [vmem:[%s450 + $0x58] sm:$0xf]
          %v851 = vld [vmem:[%s450 + $0x5c] sm:$0xf]
          %v852 = vld [vmem:[%s450 + $0x60] sm:$0xf]
          %v853 = vld [vmem:[%s450 + $0x64] sm:$0xf]
          %v854 = vld [vmem:[%s450 + $0x68] sm:$0xf]
          %v855 = vld [vmem:[%s450 + $0x6c] sm:$0xf]
          %v856 = vld [vmem:[%s450 + $0x70] sm:$0xf]
          %v857 = vld [vmem:[%s450 + $0x74] sm:$0xf]
          %v858 = vld [vmem:[%s450 + $0x78] sm:$0xf]
          %v859 = vld [vmem:[%s450 + $0x7c] sm:$0xf]
          %v860 = vld [vmem:[#allocation12] sm:$0xf]
          %v861 = vld [vmem:[#allocation12 + $0x4] sm:$0xf]
          %v862 = vld [vmem:[#allocation12 + $0x8] sm:$0xf]
          %v863 = vld [vmem:[#allocation12 + $0xc] sm:$0xf]
          %v864 = vld [vmem:[#allocation12 + $0x10] sm:$0xf]
          %v865 = vld [vmem:[#allocation12 + $0x14] sm:$0xf]
          %v866 = vld [vmem:[#allocation12 + $0x18] sm:$0xf]
          %v867 = vld [vmem:[#allocation12 + $0x1c] sm:$0xf]
          %v868 = vld [vmem:[#allocation12 + $0x20] sm:$0xf]
          %v869 = vld [vmem:[#allocation12 + $0x24] sm:$0xf]
          %v870 = vld [vmem:[#allocation12 + $0x28] sm:$0xf]
          %v871 = vld [vmem:[#allocation12 + $0x2c] sm:$0xf]
          %v872 = vld [vmem:[#allocation12 + $0x30] sm:$0xf]
          %v873 = vld [vmem:[#allocation12 + $0x34] sm:$0xf]
          %v874 = vld [vmem:[#allocation12 + $0x38] sm:$0xf]
          %v875 = vld [vmem:[#allocation12 + $0x3c] sm:$0xf]
          %v876 = vld [vmem:[%s8] sm:$0x1]
          %v878 = vlaneseq
          %v879 = vshrl.u32 %v878, 7
          %v880 = vsub.s32 0, %v879
          %v881 = vrot.slane %v876, %v880
          %v915 = vunpack.c.l.b16 %v828
          %v916 = vunpack.c.l.b16 %v829
          %v917 = vunpack.c.l.b16 %v830
          %v918 = vunpack.c.l.b16 %v831
          %v919 = vunpack.c.l.b16 %v832
          %v920 = vunpack.c.l.b16 %v833
          %v921 = vunpack.c.l.b16 %v834
          %v922 = vunpack.c.l.b16 %v835
          %v923 = vunpack.c.l.b16 %v836
          %v924 = vunpack.c.l.b16 %v837
          %v925 = vunpack.c.l.b16 %v838
          %v926 = vunpack.c.l.b16 %v839
          %v927 = vunpack.c.l.b16 %v840
          %v928 = vunpack.c.l.b16 %v841
          %v929 = vunpack.c.l.b16 %v842
          %v930 = vunpack.c.l.b16 %v843
          %v931 = vunpack.c.l.b16 %v844
          %v932 = vunpack.c.l.b16 %v845
          %v933 = vunpack.c.l.b16 %v846
          %v934 = vunpack.c.l.b16 %v847
          %v935 = vunpack.c.l.b16 %v848
          %v936 = vunpack.c.l.b16 %v849
          %v937 = vunpack.c.l.b16 %v850
          %v938 = vunpack.c.l.b16 %v851
          %v939 = vunpack.c.l.b16 %v852
          %v940 = vunpack.c.l.b16 %v853
          %v941 = vunpack.c.l.b16 %v854
          %v942 = vunpack.c.l.b16 %v855
          %v943 = vunpack.c.l.b16 %v856
          %v944 = vunpack.c.l.b16 %v857
          %v945 = vunpack.c.l.b16 %v858
          %v946 = vunpack.c.l.b16 %v859
          %v947 = vpack.c.b16 %v916, %v915
          %v948 = vpack.c.b16 %v918, %v917
          %v949 = vpack.c.b16 %v920, %v919
          %v950 = vpack.c.b16 %v922, %v921
          %v951 = vpack.c.b16 %v924, %v923
          %v952 = vpack.c.b16 %v926, %v925
          %v953 = vpack.c.b16 %v928, %v927
          %v954 = vpack.c.b16 %v930, %v929
          %v955 = vpack.c.b16 %v932, %v931
          %v956 = vpack.c.b16 %v934, %v933
          %v957 = vpack.c.b16 %v936, %v935
          %v958 = vpack.c.b16 %v938, %v937
          %v959 = vpack.c.b16 %v940, %v939
          %v960 = vpack.c.b16 %v942, %v941
          %v961 = vpack.c.b16 %v944, %v943
          %v962 = vpack.c.b16 %v946, %v945
          %v995 = vunpack.c.l.b16 %v860
          %v996 = vunpack.c.l.b16 %v861
          %v997 = vunpack.c.l.b16 %v862
          %v998 = vunpack.c.l.b16 %v863
          %v999 = vunpack.c.l.b16 %v864
          %v1000 = vunpack.c.l.b16 %v865
          %v1001 = vunpack.c.l.b16 %v866
          %v1002 = vunpack.c.l.b16 %v867
          %v1003 = vunpack.c.l.b16 %v868
          %v1004 = vunpack.c.l.b16 %v869
          %v1005 = vunpack.c.l.b16 %v870
          %v1006 = vunpack.c.l.b16 %v871
          %v1007 = vunpack.c.l.b16 %v872
          %v1008 = vunpack.c.l.b16 %v873
          %v1009 = vunpack.c.l.b16 %v874
          %v1010 = vunpack.c.l.b16 %v875
          %v1011 = vpack.c.b16 %v996, %v995
          %v1012 = vpack.c.b16 %v998, %v997
          %v1013 = vpack.c.b16 %v1000, %v999
          %v1014 = vpack.c.b16 %v1002, %v1001
          %v1015 = vpack.c.b16 %v1004, %v1003
          %v1016 = vpack.c.b16 %v1006, %v1005
          %v1017 = vpack.c.b16 %v1008, %v1007
          %v1018 = vpack.c.b16 %v1010, %v1009
          %1027 = vmatprep.subr.bf16.mxu0 0
          %1028 = vmatpush1.bf16.msra.mxu0 %v1011
          %1029 = vmatprep.subr.bf16.mxu0 0
          %1030 = vmatpush1.bf16.msra.mxu0 %v1012
          %1031 = vmatprep.subr.bf16.mxu0 0
          %1032 = vmatpush1.bf16.msra.mxu0 %v1013
          %1033 = vmatprep.subr.bf16.mxu0 0
          %1034 = vmatpush1.bf16.msra.mxu0 %v1014
          %1035 = vmatprep.subr.bf16.mxu0 0
          %1036 = vmatpush1.bf16.msra.mxu0 %v1015
          %1037 = vmatprep.subr.bf16.mxu0 0
          %1038 = vmatpush1.bf16.msra.mxu0 %v1016
          %1039 = vmatprep.subr.bf16.mxu0 0
          %1040 = vmatpush1.bf16.msra.mxu0 %v1017
          %1041 = vmatprep.subr.bf16.mxu0 0
          %1042 = vmatpush1.bf16.msra.mxu0 %v1018
          %1043 = vmatprep.subr.bf16.mxu0 0
          %1044 = vmatpush1.bf16.msra.mxu0 0
          %1045 = vmatprep.subr.bf16.mxu0 0
          %1046 = vmatpush1.bf16.msra.mxu0 0
          %1047 = vmatprep.subr.bf16.mxu0 0
          %1048 = vmatpush1.bf16.msra.mxu0 0
          %1049 = vmatprep.subr.bf16.mxu0 0
          %1050 = vmatpush1.bf16.msra.mxu0 0
          %1051 = vmatprep.subr.bf16.mxu0 0
          %1052 = vmatpush1.bf16.msra.mxu0 0
          %1053 = vmatprep.subr.bf16.mxu0 0
          %1054 = vmatpush1.bf16.msra.mxu0 0
          %1055 = vmatprep.subr.bf16.mxu0 0
          %1056 = vmatpush1.bf16.msra.mxu0 0
          %1057 = vmatprep.subr.bf16.mxu0 0
          %1058 = vmatpush1.bf16.msra.mxu0 0
          %1059 = vmatprep.mubr.bf16.mxu0 0
          %1060 = vmatmul.mubr.bf16.gmra.mrb[0].mxu0 %v947
          %v1061 = vpop.f32.mrb[0].mxu0
          %v1062 = vadd.f32 %v881, %v1061
          %v1063 = vpop.f32.mrb[0].mxu0
          %v1064 = vpop.f32.mrb[0].mxu0
          %v1065 = vadd.f32 %v881, %v1064
          %v1066 = vpop.f32.mrb[0].mxu0
          %1067 = vmatprep.mubr.bf16.mxu0 0
          %1068 = vmatmul.mubr.bf16.gmra.mrb[0].mxu0 %v948
          %v1069 = vpop.f32.mrb[0].mxu0
          %v1070 = vadd.f32 %v881, %v1069
          %v1071 = vpop.f32.mrb[0].mxu0
          %v1072 = vpop.f32.mrb[0].mxu0
          %v1073 = vadd.f32 %v881, %v1072
          %v1074 = vpop.f32.mrb[0].mxu0
          %1075 = vmatprep.mubr.bf16.mxu0 0
          %1076 = vmatmul.mubr.bf16.gmra.mrb[0].mxu0 %v949
          %v1077 = vpop.f32.mrb[0].mxu0
          %v1078 = vadd.f32 %v881, %v1077
          %v1079 = vpop.f32.mrb[0].mxu0
          %v1080 = vpop.f32.mrb[0].mxu0
          %v1081 = vadd.f32 %v881, %v1080
          %v1082 = vpop.f32.mrb[0].mxu0
          %1083 = vmatprep.mubr.bf16.mxu0 0
          %1084 = vmatmul.mubr.bf16.gmra.mrb[0].mxu0 %v950
          %v1085 = vpop.f32.mrb[0].mxu0
          %v1086 = vadd.f32 %v881, %v1085
          %v1087 = vpop.f32.mrb[0].mxu0
          %v1088 = vpop.f32.mrb[0].mxu0
          %v1089 = vadd.f32 %v881, %v1088
          %v1090 = vpop.f32.mrb[0].mxu0
          %1091 = vmatprep.mubr.bf16.mxu0 0
          %1092 = vmatmul.mubr.bf16.gmra.mrb[0].mxu0 %v951
          %v1093 = vpop.f32.mrb[0].mxu0
          %v1094 = vadd.f32 %v881, %v1093
          %v1095 = vpop.f32.mrb[0].mxu0
          %v1096 = vpop.f32.mrb[0].mxu0
          %v1097 = vadd.f32 %v881, %v1096
          %v1098 = vpop.f32.mrb[0].mxu0
          %1099 = vmatprep.mubr.bf16.mxu0 0
          %1100 = vmatmul.mubr.bf16.gmra.mrb[0].mxu0 %v952
          %v1101 = vpop.f32.mrb[0].mxu0
          %v1102 = vadd.f32 %v881, %v1101
          %v1103 = vpop.f32.mrb[0].mxu0
          %v1104 = vpop.f32.mrb[0].mxu0
          %v1105 = vadd.f32 %v881, %v1104
          %v1106 = vpop.f32.mrb[0].mxu0
          %1107 = vmatprep.mubr.bf16.mxu0 0
          %1108 = vmatmul.mubr.bf16.gmra.mrb[0].mxu0 %v953
          %v1109 = vpop.f32.mrb[0].mxu0
          %v1110 = vadd.f32 %v881, %v1109
          %v1111 = vpop.f32.mrb[0].mxu0
          %v1112 = vpop.f32.mrb[0].mxu0
          %v1113 = vadd.f32 %v881, %v1112
          %v1114 = vpop.f32.mrb[0].mxu0
          %1115 = vmatprep.mubr.bf16.mxu0 0
          %1116 = vmatmul.mubr.bf16.gmra.mrb[0].mxu0 %v954
          %v1117 = vpop.f32.mrb[0].mxu0
          %v1118 = vadd.f32 %v881, %v1117
          %v1119 = vpop.f32.mrb[0].mxu0
          %v1120 = vpop.f32.mrb[0].mxu0
          %v1121 = vadd.f32 %v881, %v1120
          %v1122 = vpop.f32.mrb[0].mxu0
          %1123 = vmatprep.mubr.bf16.mxu0 0
          %1124 = vmatmul.mubr.bf16.gmra.mrb[0].mxu0 %v955
          %v1125 = vpop.f32.mrb[0].mxu0
          %v1126 = vadd.f32 %v881, %v1125
          %v1127 = vpop.f32.mrb[0].mxu0
          %v1128 = vpop.f32.mrb[0].mxu0
          %v1129 = vadd.f32 %v881, %v1128
          %v1130 = vpop.f32.mrb[0].mxu0
          %1131 = vmatprep.mubr.bf16.mxu0 0
          %1132 = vmatmul.mubr.bf16.gmra.mrb[0].mxu0 %v956
          %v1133 = vpop.f32.mrb[0].mxu0
          %v1134 = vadd.f32 %v881, %v1133
          %v1135 = vpop.f32.mrb[0].mxu0
          %v1136 = vpop.f32.mrb[0].mxu0
          %v1137 = vadd.f32 %v881, %v1136
          %v1138 = vpop.f32.mrb[0].mxu0
          %1139 = vmatprep.mubr.bf16.mxu0 0
          %1140 = vmatmul.mubr.bf16.gmra.mrb[0].mxu0 %v957
          %v1141 = vpop.f32.mrb[0].mxu0
          %v1142 = vadd.f32 %v881, %v1141
          %v1143 = vpop.f32.mrb[0].mxu0
          %v1144 = vpop.f32.mrb[0].mxu0
          %v1145 = vadd.f32 %v881, %v1144
          %v1146 = vpop.f32.mrb[0].mxu0
          %1147 = vmatprep.mubr.bf16.mxu0 0
          %1148 = vmatmul.mubr.bf16.gmra.mrb[0].mxu0 %v958
          %v1149 = vpop.f32.mrb[0].mxu0
          %v1150 = vadd.f32 %v881, %v1149
          %v1151 = vpop.f32.mrb[0].mxu0
          %v1152 = vpop.f32.mrb[0].mxu0
          %v1153 = vadd.f32 %v881, %v1152
          %v1154 = vpop.f32.mrb[0].mxu0
          %1155 = vmatprep.mubr.bf16.mxu0 0
          %1156 = vmatmul.mubr.bf16.gmra.mrb[0].mxu0 %v959
          %v1157 = vpop.f32.mrb[0].mxu0
          %v1158 = vadd.f32 %v881, %v1157
          %v1159 = vpop.f32.mrb[0].mxu0
          %v1160 = vpop.f32.mrb[0].mxu0
          %v1161 = vadd.f32 %v881, %v1160
          %v1162 = vpop.f32.mrb[0].mxu0
          %1163 = vmatprep.mubr.bf16.mxu0 0
          %1164 = vmatmul.mubr.bf16.gmra.mrb[0].mxu0 %v960
          %v1165 = vpop.f32.mrb[0].mxu0
          %v1166 = vadd.f32 %v881, %v1165
          %v1167 = vpop.f32.mrb[0].mxu0
          %v1168 = vpop.f32.mrb[0].mxu0
          %v1169 = vadd.f32 %v881, %v1168
          %v1170 = vpop.f32.mrb[0].mxu0
          %1171 = vmatprep.mubr.bf16.mxu0 0
          %1172 = vmatmul.mubr.bf16.gmra.mrb[0].mxu0 %v961
          %v1173 = vpop.f32.mrb[0].mxu0
          %v1174 = vadd.f32 %v881, %v1173
          %v1175 = vpop.f32.mrb[0].mxu0
          %v1176 = vpop.f32.mrb[0].mxu0
          %v1177 = vadd.f32 %v881, %v1176
          %v1178 = vpop.f32.mrb[0].mxu0
          %1179 = vmatprep.mubr.bf16.mxu0 0
          %1180 = vmatmul.mubr.bf16.gmra.mrb[0].mxu0 %v962
          %v1181 = vpop.f32.mrb[0].mxu0
          %v1182 = vadd.f32 %v881, %v1181
          %v1183 = vpop.f32.mrb[0].mxu0
          %v1184 = vpop.f32.mrb[0].mxu0
          %v1185 = vadd.f32 %v881, %v1184
          %v1186 = vpop.f32.mrb[0].mxu0
          %1187 = vdwg.mxu0
          %v1188 = vmax.f32 %v1062, 0.0
          %v1189 = vmax.f32 %v1065, 0.0
          %v1190 = vmax.f32 %v1070, 0.0
          %v1191 = vmax.f32 %v1073, 0.0
          %v1192 = vmax.f32 %v1078, 0.0
          %v1193 = vmax.f32 %v1081, 0.0
          %v1194 = vmax.f32 %v1086, 0.0
          %v1195 = vmax.f32 %v1089, 0.0
          %v1196 = vmax.f32 %v1094, 0.0
          %v1197 = vmax.f32 %v1097, 0.0
          %v1198 = vmax.f32 %v1102, 0.0
          %v1199 = vmax.f32 %v1105, 0.0
          %v1200 = vmax.f32 %v1110, 0.0
          %v1201 = vmax.f32 %v1113, 0.0
          %v1202 = vmax.f32 %v1118, 0.0
          %v1203 = vmax.f32 %v1121, 0.0
          %v1204 = vmax.f32 %v1126, 0.0
          %v1205 = vmax.f32 %v1129, 0.0
          %v1206 = vmax.f32 %v1134, 0.0
          %v1207 = vmax.f32 %v1137, 0.0
          %v1208 = vmax.f32 %v1142, 0.0
          %v1209 = vmax.f32 %v1145, 0.0
          %v1210 = vmax.f32 %v1150, 0.0
          %v1211 = vmax.f32 %v1153, 0.0
          %v1212 = vmax.f32 %v1158, 0.0
          %v1213 = vmax.f32 %v1161, 0.0
          %v1214 = vmax.f32 %v1166, 0.0
          %v1215 = vmax.f32 %v1169, 0.0
          %v1216 = vmax.f32 %v1174, 0.0
          %v1217 = vmax.f32 %v1177, 0.0
          %v1218 = vmax.f32 %v1182, 0.0
          %v1219 = vmax.f32 %v1185, 0.0
          %v1220 = vpack.c.bf16 %v1189, %v1188
          %v1221 = vpack.c.bf16 %v1191, %v1190
          %v1222 = vpack.c.bf16 %v1193, %v1192
          %v1223 = vpack.c.bf16 %v1195, %v1194
          %v1224 = vpack.c.bf16 %v1197, %v1196
          %v1225 = vpack.c.bf16 %v1199, %v1198
          %v1226 = vpack.c.bf16 %v1201, %v1200
          %v1227 = vpack.c.bf16 %v1203, %v1202
          %v1228 = vpack.c.bf16 %v1205, %v1204
          %v1229 = vpack.c.bf16 %v1207, %v1206
          %v1230 = vpack.c.bf16 %v1209, %v1208
          %v1231 = vpack.c.bf16 %v1211, %v1210
          %v1232 = vpack.c.bf16 %v1213, %v1212
          %v1233 = vpack.c.bf16 %v1215, %v1214
          %v1234 = vpack.c.bf16 %v1217, %v1216
          %v1235 = vpack.c.bf16 %v1219, %v1218
          %v1236 = vld [vmem:[%s547] sm:$0x3]
          %s1237 = smul.u32 %s43, 128
          %v1238 = vstv %s1237
          %v1239 = vsub.s32 %v1236, %v1238
          %v1240 = vlaneseq
          %v1241 = vshrl.u32 %v1240, 7
          %v1242 = vadd.s32 %v1241, 8
          %v1243 = vadd.s32 %v1241, 16
          %v1244 = vadd.s32 %v1241, 24
          %v1245 = vadd.s32 %v1241, 32
          %v1246 = vadd.s32 %v1241, 40
          %v1247 = vadd.s32 %v1241, 48
          %v1248 = vadd.s32 %v1241, 56
          %v1249 = vadd.s32 %v1241, 64
          %v1250 = vadd.s32 %v1241, 72
          %v1251 = vadd.s32 %v1241, 80
          %v1252 = vadd.s32 %v1241, 88
          %v1253 = vadd.s32 %v1241, 96
          %v1254 = vadd.s32 %v1241, 104
          %v1255 = vadd.s32 %v1241, 112
          %v1256 = vadd.s32 %v1241, 120
          %v1257 = vlaneseq
          %v1258 = vshrl.u32 %v1257, 7
          %v1259 = vsub.s32 0, %v1258
          %v1260 = vrot.slane %v1239, %v1259
          %v1261 = vlaneseq
          %v1262 = vshrl.u32 %v1261, 7
          %v1263 = vsub.s32 1, %v1262
          %v1264 = vrot.slane %v1239, %v1263
          %vm1265 = vcmp.eq.s32.totalorder %v1241, %v1260
          %vm1266 = vcmp.eq.s32.totalorder %v1241, %v1264
          %vm1267 = vcmp.eq.s32.totalorder %v1242, %v1260
          %vm1268 = vcmp.eq.s32.totalorder %v1242, %v1264
          %vm1269 = vcmp.eq.s32.totalorder %v1243, %v1260
          %vm1270 = vcmp.eq.s32.totalorder %v1243, %v1264
          %vm1271 = vcmp.eq.s32.totalorder %v1244, %v1260
          %vm1272 = vcmp.eq.s32.totalorder %v1244, %v1264
          %vm1273 = vcmp.eq.s32.totalorder %v1245, %v1260
          %vm1274 = vcmp.eq.s32.totalorder %v1245, %v1264
          %vm1275 = vcmp.eq.s32.totalorder %v1246, %v1260
          %vm1276 = vcmp.eq.s32.totalorder %v1246, %v1264
          %vm1277 = vcmp.eq.s32.totalorder %v1247, %v1260
          %vm1278 = vcmp.eq.s32.totalorder %v1247, %v1264
          %vm1279 = vcmp.eq.s32.totalorder %v1248, %v1260
          %vm1280 = vcmp.eq.s32.totalorder %v1248, %v1264
          %vm1281 = vcmp.eq.s32.totalorder %v1249, %v1260
          %vm1282 = vcmp.eq.s32.totalorder %v1249, %v1264
          %vm1283 = vcmp.eq.s32.totalorder %v1250, %v1260
          %vm1284 = vcmp.eq.s32.totalorder %v1250, %v1264
          %vm1285 = vcmp.eq.s32.totalorder %v1251, %v1260
          %vm1286 = vcmp.eq.s32.totalorder %v1251, %v1264
          %vm1287 = vcmp.eq.s32.totalorder %v1252, %v1260
          %vm1288 = vcmp.eq.s32.totalorder %v1252, %v1264
          %vm1289 = vcmp.eq.s32.totalorder %v1253, %v1260
          %vm1290 = vcmp.eq.s32.totalorder %v1253, %v1264
          %vm1291 = vcmp.eq.s32.totalorder %v1254, %v1260
          %vm1292 = vcmp.eq.s32.totalorder %v1254, %v1264
          %vm1293 = vcmp.eq.s32.totalorder %v1255, %v1260
          %vm1294 = vcmp.eq.s32.totalorder %v1255, %v1264
          %vm1295 = vcmp.eq.s32.totalorder %v1256, %v1260
          %vm1296 = vcmp.eq.s32.totalorder %v1256, %v1264
          %v1297 = vsel %vm1265, 1.0, 0.0
          %v1298 = vsel %vm1266, 1.0, 0.0
          %v1299 = vsel %vm1267, 1.0, 0.0
          %v1300 = vsel %vm1268, 1.0, 0.0
          %v1301 = vsel %vm1269, 1.0, 0.0
          %v1302 = vsel %vm1270, 1.0, 0.0
          %v1303 = vsel %vm1271, 1.0, 0.0
          %v1304 = vsel %vm1272, 1.0, 0.0
          %v1305 = vsel %vm1273, 1.0, 0.0
          %v1306 = vsel %vm1274, 1.0, 0.0
          %v1307 = vsel %vm1275, 1.0, 0.0
          %v1308 = vsel %vm1276, 1.0, 0.0
          %v1309 = vsel %vm1277, 1.0, 0.0
          %v1310 = vsel %vm1278, 1.0, 0.0
          %v1311 = vsel %vm1279, 1.0, 0.0
          %v1312 = vsel %vm1280, 1.0, 0.0
          %v1313 = vsel %vm1281, 1.0, 0.0
          %v1314 = vsel %vm1282, 1.0, 0.0
          %v1315 = vsel %vm1283, 1.0, 0.0
          %v1316 = vsel %vm1284, 1.0, 0.0
          %v1317 = vsel %vm1285, 1.0, 0.0
          %v1318 = vsel %vm1286, 1.0, 0.0
          %v1319 = vsel %vm1287, 1.0, 0.0
          %v1320 = vsel %vm1288, 1.0, 0.0
          %v1321 = vsel %vm1289, 1.0, 0.0
          %v1322 = vsel %vm1290, 1.0, 0.0
          %v1323 = vsel %vm1291, 1.0, 0.0
          %v1324 = vsel %vm1292, 1.0, 0.0
          %v1325 = vsel %vm1293, 1.0, 0.0
          %v1326 = vsel %vm1294, 1.0, 0.0
          %v1327 = vsel %vm1295, 1.0, 0.0
          %v1328 = vsel %vm1296, 1.0, 0.0
          %v1329 = vpack.c.bf16 %v1299, %v1297
          %v1330 = vpack.c.bf16 %v1300, %v1298
          %v1331 = vpack.c.bf16 %v1303, %v1301
          %v1332 = vpack.c.bf16 %v1304, %v1302
          %v1333 = vpack.c.bf16 %v1307, %v1305
          %v1334 = vpack.c.bf16 %v1308, %v1306
          %v1335 = vpack.c.bf16 %v1311, %v1309
          %v1336 = vpack.c.bf16 %v1312, %v1310
          %v1337 = vpack.c.bf16 %v1315, %v1313
          %v1338 = vpack.c.bf16 %v1316, %v1314
          %v1339 = vpack.c.bf16 %v1319, %v1317
          %v1340 = vpack.c.bf16 %v1320, %v1318
          %v1341 = vpack.c.bf16 %v1323, %v1321
          %v1342 = vpack.c.bf16 %v1324, %v1322
          %v1343 = vpack.c.bf16 %v1327, %v1325
          %v1344 = vpack.c.bf16 %v1328, %v1326
          %v1345 = vld [vmem:[#allocation2] sm:$0xff]
          %v1346 = vld [vmem:[#allocation2 + $0x8] sm:$0xff]
          %v1347 = vld [vmem:[#allocation2 + $0x10] sm:$0xff]
          %v1348 = vld [vmem:[#allocation2 + $0x18] sm:$0xff]
          %v1349 = vld [vmem:[#allocation2 + $0x20] sm:$0xff]
          %v1350 = vld [vmem:[#allocation2 + $0x28] sm:$0xff]
          %v1351 = vld [vmem:[#allocation2 + $0x30] sm:$0xff]
          %v1352 = vld [vmem:[#allocation2 + $0x38] sm:$0xff]
          %v1353 = vld [vmem:[#allocation2 + $0x40] sm:$0xff]
          %v1354 = vld [vmem:[#allocation2 + $0x48] sm:$0xff]
          %v1355 = vld [vmem:[#allocation2 + $0x50] sm:$0xff]
          %v1356 = vld [vmem:[#allocation2 + $0x58] sm:$0xff]
          %v1357 = vld [vmem:[#allocation2 + $0x60] sm:$0xff]
          %v1358 = vld [vmem:[#allocation2 + $0x68] sm:$0xff]
          %v1359 = vld [vmem:[#allocation2 + $0x70] sm:$0xff]
          %v1360 = vld [vmem:[#allocation2 + $0x78] sm:$0xff]
          %1361 = vmatprep.subr.bf16.mxu0 0
          %1362 = vmatpush1.bf16.msra.mxu0 %v1220
          %1363 = vmatprep.subr.bf16.mxu0 0
          %1364 = vmatpush1.bf16.msra.mxu0 %v1221
          %1365 = vmatprep.subr.bf16.mxu0 0
          %1366 = vmatpush1.bf16.msra.mxu0 %v1222
          %1367 = vmatprep.subr.bf16.mxu0 0
          %1368 = vmatpush1.bf16.msra.mxu0 %v1223
          %1369 = vmatprep.subr.bf16.mxu0 0
          %1370 = vmatpush1.bf16.msra.mxu0 %v1224
          %1371 = vmatprep.subr.bf16.mxu0 0
          %1372 = vmatpush1.bf16.msra.mxu0 %v1225
          %1373 = vmatprep.subr.bf16.mxu0 0
          %1374 = vmatpush1.bf16.msra.mxu0 %v1226
          %1375 = vmatprep.subr.bf16.mxu0 0
          %1376 = vmatpush1.bf16.msra.mxu0 %v1227
          %1377 = vmatprep.subr.bf16.mxu0 0
          %1378 = vmatpush1.bf16.msra.mxu0 %v1228
          %1379 = vmatprep.subr.bf16.mxu0 0
          %1380 = vmatpush1.bf16.msra.mxu0 %v1229
          %1381 = vmatprep.subr.bf16.mxu0 0
          %1382 = vmatpush1.bf16.msra.mxu0 %v1230
          %1383 = vmatprep.subr.bf16.mxu0 0
          %1384 = vmatpush1.bf16.msra.mxu0 %v1231
          %1385 = vmatprep.subr.bf16.mxu0 0
          %1386 = vmatpush1.bf16.msra.mxu0 %v1232
          %1387 = vmatprep.subr.bf16.mxu0 0
          %1388 = vmatpush1.bf16.msra.mxu0 %v1233
          %1389 = vmatprep.subr.bf16.mxu0 0
          %1390 = vmatpush1.bf16.msra.mxu0 %v1234
          %1391 = vmatprep.subr.bf16.mxu0 0
          %1392 = vmatpush1.bf16.msra.mxu0 %v1235
          %1393 = vmatprep.mubr.bf16.mxu0 %v1330
          %1394 = vmatmul.mubr.bf16.gmra.mrb[0].mxu0 %v1329
          %v1395 = vpop.f32.mrb[0].mxu0
          %v1396 = vadd.f32 0.0, %v1395
          %v1397 = vpop.f32.mrb[0].mxu0
          %v1398 = vpop.f32.mrb[0].mxu0
          %v1399 = vadd.f32 0.0, %v1398
          %v1400 = vpop.f32.mrb[0].mxu0
          %1401 = vmatprep.mubr.bf16.mxu0 %v1332
          %1402 = vmatmul.mubr.bf16.gmra.mrb[0].mxu0 %v1331
          %v1403 = vpop.f32.mrb[0].mxu0
          %v1404 = vadd.f32 0.0, %v1403
          %v1405 = vpop.f32.mrb[0].mxu0
          %v1406 = vpop.f32.mrb[0].mxu0
          %v1407 = vadd.f32 0.0, %v1406
          %v1408 = vpop.f32.mrb[0].mxu0
          %1409 = vmatprep.mubr.bf16.mxu0 %v1334
          %1410 = vmatmul.mubr.bf16.gmra.mrb[0].mxu0 %v1333
          %v1411 = vpop.f32.mrb[0].mxu0
          %v1412 = vadd.f32 0.0, %v1411
          %v1413 = vpop.f32.mrb[0].mxu0
          %v1414 = vpop.f32.mrb[0].mxu0
          %v1415 = vadd.f32 0.0, %v1414
          %v1416 = vpop.f32.mrb[0].mxu0
          %1417 = vmatprep.mubr.bf16.mxu0 %v1336
          %1418 = vmatmul.mubr.bf16.gmra.mrb[0].mxu0 %v1335
          %v1419 = vpop.f32.mrb[0].mxu0
          %v1420 = vadd.f32 0.0, %v1419
          %v1421 = vpop.f32.mrb[0].mxu0
          %v1422 = vpop.f32.mrb[0].mxu0
          %v1423 = vadd.f32 0.0, %v1422
          %v1424 = vpop.f32.mrb[0].mxu0
          %1425 = vmatprep.mubr.bf16.mxu0 %v1338
          %1426 = vmatmul.mubr.bf16.gmra.mrb[0].mxu0 %v1337
          %v1427 = vpop.f32.mrb[0].mxu0
          %v1428 = vadd.f32 0.0, %v1427
          %v1429 = vpop.f32.mrb[0].mxu0
          %v1430 = vpop.f32.mrb[0].mxu0
          %v1431 = vadd.f32 0.0, %v1430
          %v1432 = vpop.f32.mrb[0].mxu0
          %1433 = vmatprep.mubr.bf16.mxu0 %v1340
          %1434 = vmatmul.mubr.bf16.gmra.mrb[0].mxu0 %v1339
          %v1435 = vpop.f32.mrb[0].mxu0
          %v1436 = vadd.f32 0.0, %v1435
          %v1437 = vpop.f32.mrb[0].mxu0
          %v1438 = vpop.f32.mrb[0].mxu0
          %v1439 = vadd.f32 0.0, %v1438
          %v1440 = vpop.f32.mrb[0].mxu0
          %1441 = vmatprep.mubr.bf16.mxu0 %v1342
          %1442 = vmatmul.mubr.bf16.gmra.mrb[0].mxu0 %v1341
          %v1443 = vpop.f32.mrb[0].mxu0
          %v1444 = vadd.f32 0.0, %v1443
          %v1445 = vpop.f32.mrb[0].mxu0
          %v1446 = vpop.f32.mrb[0].mxu0
          %v1447 = vadd.f32 0.0, %v1446
          %v1448 = vpop.f32.mrb[0].mxu0
          %1449 = vmatprep.mubr.bf16.mxu0 %v1344
          %1450 = vmatmul.mubr.bf16.gmra.mrb[0].mxu0 %v1343
          %v1451 = vpop.f32.mrb[0].mxu0
          %v1452 = vadd.f32 0.0, %v1451
          %v1453 = vpop.f32.mrb[0].mxu0
          %v1454 = vpop.f32.mrb[0].mxu0
          %v1455 = vadd.f32 0.0, %v1454
          %v1456 = vpop.f32.mrb[0].mxu0
          %1457 = vdwg.mxu0
          %v1458 = vadd.f32 %v1345, %v1396
          %v1459 = vadd.f32 %v1346, %v1399
          %v1460 = vadd.f32 %v1347, %v1404
          %v1461 = vadd.f32 %v1348, %v1407
          %v1462 = vadd.f32 %v1349, %v1412
          %v1463 = vadd.f32 %v1350, %v1415
          %v1464 = vadd.f32 %v1351, %v1420
          %v1465 = vadd.f32 %v1352, %v1423
          %v1466 = vadd.f32 %v1353, %v1428
          %v1467 = vadd.f32 %v1354, %v1431
          %v1468 = vadd.f32 %v1355, %v1436
          %v1469 = vadd.f32 %v1356, %v1439
          %v1470 = vadd.f32 %v1357, %v1444
          %v1471 = vadd.f32 %v1358, %v1447
          %v1472 = vadd.f32 %v1359, %v1452
          %v1473 = vadd.f32 %v1360, %v1455
          %1474 = vst [vmem:[#allocation2] sm:$0xff] %v1458
          %1475 = vst [vmem:[#allocation2 + $0x8] sm:$0xff] %v1459
          %1476 = vst [vmem:[#allocation2 + $0x10] sm:$0xff] %v1460
          %1477 = vst [vmem:[#allocation2 + $0x18] sm:$0xff] %v1461
          %1478 = vst [vmem:[#allocation2 + $0x20] sm:$0xff] %v1462
          %1479 = vst [vmem:[#allocation2 + $0x28] sm:$0xff] %v1463
          %1480 = vst [vmem:[#allocation2 + $0x30] sm:$0xff] %v1464
          %1481 = vst [vmem:[#allocation2 + $0x38] sm:$0xff] %v1465
          %1482 = vst [vmem:[#allocation2 + $0x40] sm:$0xff] %v1466
          %1483 = vst [vmem:[#allocation2 + $0x48] sm:$0xff] %v1467
          %1484 = vst [vmem:[#allocation2 + $0x50] sm:$0xff] %v1468
          %1485 = vst [vmem:[#allocation2 + $0x58] sm:$0xff] %v1469
          %1486 = vst [vmem:[#allocation2 + $0x60] sm:$0xff] %v1470
          %1487 = vst [vmem:[#allocation2 + $0x68] sm:$0xff] %v1471
          %1488 = vst [vmem:[#allocation2 + $0x70] sm:$0xff] %v1472
          %1489 = vst [vmem:[#allocation2 + $0x78] sm:$0xff] %v1473
        $region80: #{tpu_custom_call.1} parent=51 // pred_fallthru
          _
        %p1490 = scmp.eq.s32.totalorder %s44, 1
        // Predicated region
        $region81: #{tpu_custom_call.1} parent=51 // pred_check
          %p1491 = pneg %p1490
        $region82: #{tpu_custom_call.1} parent=51 // pred_check_branch
          %1493 = sbr.rel (%p1491) target = $region84
        $region83: #{tpu_custom_call.1} parent=51 // pred_region
          %v1494 = vld [vmem:[#allocation2] sm:$0xff]
          %v1495 = vld [vmem:[#allocation2 + $0x8] sm:$0xff]
          %v1496 = vld [vmem:[#allocation2 + $0x10] sm:$0xff]
          %v1497 = vld [vmem:[#allocation2 + $0x18] sm:$0xff]
          %v1498 = vld [vmem:[#allocation2 + $0x20] sm:$0xff]
          %v1499 = vld [vmem:[#allocation2 + $0x28] sm:$0xff]
          %v1500 = vld [vmem:[#allocation2 + $0x30] sm:$0xff]
          %v1501 = vld [vmem:[#allocation2 + $0x38] sm:$0xff]
          %v1502 = vld [vmem:[#allocation2 + $0x40] sm:$0xff]
          %v1503 = vld [vmem:[#allocation2 + $0x48] sm:$0xff]
          %v1504 = vld [vmem:[#allocation2 + $0x50] sm:$0xff]
          %v1505 = vld [vmem:[#allocation2 + $0x58] sm:$0xff]
          %v1506 = vld [vmem:[#allocation2 + $0x60] sm:$0xff]
          %v1507 = vld [vmem:[#allocation2 + $0x68] sm:$0xff]
          %v1508 = vld [vmem:[#allocation2 + $0x70] sm:$0xff]
          %v1509 = vld [vmem:[#allocation2 + $0x78] sm:$0xff]
          %v1510 = vpack.c.bf16 %v1495, %v1494
          %v1511 = vpack.c.bf16 %v1497, %v1496
          %v1512 = vpack.c.bf16 %v1499, %v1498
          %v1513 = vpack.c.bf16 %v1501, %v1500
          %v1514 = vpack.c.bf16 %v1503, %v1502
          %v1515 = vpack.c.bf16 %v1505, %v1504
          %v1516 = vpack.c.bf16 %v1507, %v1506
          %v1517 = vpack.c.bf16 %v1509, %v1508
          %v1518 = vld [vmem:[#allocation3] sm:$0xff]
          %v1519 = vld [vmem:[#allocation3 + $0x8] sm:$0xff]
          %v1520 = vld [vmem:[#allocation3 + $0x10] sm:$0xff]
          %v1521 = vld [vmem:[#allocation3 + $0x18] sm:$0xff]
          %v1522 = vld [vmem:[#allocation3 + $0x20] sm:$0xff]
          %v1523 = vld [vmem:[#allocation3 + $0x28] sm:$0xff]
          %v1524 = vld [vmem:[#allocation3 + $0x30] sm:$0xff]
          %v1525 = vld [vmem:[#allocation3 + $0x38] sm:$0xff]
          %v1526 = vld [vmem:[#allocation3 + $0x40] sm:$0xff]
          %v1527 = vld [vmem:[#allocation3 + $0x48] sm:$0xff]
          %v1528 = vld [vmem:[#allocation3 + $0x50] sm:$0xff]
          %v1529 = vld [vmem:[#allocation3 + $0x58] sm:$0xff]
          %v1530 = vld [vmem:[#allocation3 + $0x60] sm:$0xff]
          %v1531 = vld [vmem:[#allocation3 + $0x68] sm:$0xff]
          %v1532 = vld [vmem:[#allocation3 + $0x70] sm:$0xff]
          %v1533 = vld [vmem:[#allocation3 + $0x78] sm:$0xff]
          %v1534 = vld [vmem:[#allocation15] sm:$0xf]
          %v1535 = vld [vmem:[#allocation15 + $0x4] sm:$0xf]
          %v1536 = vld [vmem:[#allocation15 + $0x8] sm:$0xf]
          %v1537 = vld [vmem:[#allocation15 + $0xc] sm:$0xf]
          %v1538 = vld [vmem:[#allocation15 + $0x10] sm:$0xf]
          %v1539 = vld [vmem:[#allocation15 + $0x14] sm:$0xf]
          %v1540 = vld [vmem:[#allocation15 + $0x18] sm:$0xf]
          %v1541 = vld [vmem:[#allocation15 + $0x1c] sm:$0xf]
          %v1542 = vld [vmem:[#allocation15 + $0x20] sm:$0xf]
          %v1543 = vld [vmem:[#allocation15 + $0x24] sm:$0xf]
          %v1544 = vld [vmem:[#allocation15 + $0x28] sm:$0xf]
          %v1545 = vld [vmem:[#allocation15 + $0x2c] sm:$0xf]
          %v1546 = vld [vmem:[#allocation15 + $0x30] sm:$0xf]
          %v1547 = vld [vmem:[#allocation15 + $0x34] sm:$0xf]
          %v1548 = vld [vmem:[#allocation15 + $0x38] sm:$0xf]
          %v1549 = vld [vmem:[#allocation15 + $0x3c] sm:$0xf]
          %v1566 = vunpack.c.l.b16 %v1534
          %v1567 = vunpack.c.l.b16 %v1535
          %v1568 = vunpack.c.l.b16 %v1536
          %v1569 = vunpack.c.l.b16 %v1537
          %v1570 = vunpack.c.l.b16 %v1538
          %v1571 = vunpack.c.l.b16 %v1539
          %v1572 = vunpack.c.l.b16 %v1540
          %v1573 = vunpack.c.l.b16 %v1541
          %v1574 = vunpack.c.l.b16 %v1542
          %v1575 = vunpack.c.l.b16 %v1543
          %v1576 = vunpack.c.l.b16 %v1544
          %v1577 = vunpack.c.l.b16 %v1545
          %v1578 = vunpack.c.l.b16 %v1546
          %v1579 = vunpack.c.l.b16 %v1547
          %v1580 = vunpack.c.l.b16 %v1548
          %v1581 = vunpack.c.l.b16 %v1549
          %v1582 = vpack.c.b16 %v1567, %v1566
          %v1583 = vpack.c.b16 %v1569, %v1568
          %v1584 = vpack.c.b16 %v1571, %v1570
          %v1585 = vpack.c.b16 %v1573, %v1572
          %v1586 = vpack.c.b16 %v1575, %v1574
          %v1587 = vpack.c.b16 %v1577, %v1576
          %v1588 = vpack.c.b16 %v1579, %v1578
          %v1589 = vpack.c.b16 %v1581, %v1580
          %1598 = vmatprep.subr.bf16.mxu0 0
          %1599 = vmatpush1.bf16.msra.mxu0 %v1582
          %1600 = vmatprep.subr.bf16.mxu0 0
          %1601 = vmatpush1.bf16.msra.mxu0 %v1583
          %1602 = vmatprep.subr.bf16.mxu0 0
          %1603 = vmatpush1.bf16.msra.mxu0 %v1584
          %1604 = vmatprep.subr.bf16.mxu0 0
          %1605 = vmatpush1.bf16.msra.mxu0 %v1585
          %1606 = vmatprep.subr.bf16.mxu0 0
          %1607 = vmatpush1.bf16.msra.mxu0 %v1586
          %1608 = vmatprep.subr.bf16.mxu0 0
          %1609 = vmatpush1.bf16.msra.mxu0 %v1587
          %1610 = vmatprep.subr.bf16.mxu0 0
          %1611 = vmatpush1.bf16.msra.mxu0 %v1588
          %1612 = vmatprep.subr.bf16.mxu0 0
          %1613 = vmatpush1.bf16.msra.mxu0 %v1589
          %1614 = vmatprep.subr.bf16.mxu0 0
          %1615 = vmatpush1.bf16.msra.mxu0 0
          %1616 = vmatprep.subr.bf16.mxu0 0
          %1617 = vmatpush1.bf16.msra.mxu0 0
          %1618 = vmatprep.subr.bf16.mxu0 0
          %1619 = vmatpush1.bf16.msra.mxu0 0
          %1620 = vmatprep.subr.bf16.mxu0 0
          %1621 = vmatpush1.bf16.msra.mxu0 0
          %1622 = vmatprep.subr.bf16.mxu0 0
          %1623 = vmatpush1.bf16.msra.mxu0 0
          %1624 = vmatprep.subr.bf16.mxu0 0
          %1625 = vmatpush1.bf16.msra.mxu0 0
          %1626 = vmatprep.subr.bf16.mxu0 0
          %1627 = vmatpush1.bf16.msra.mxu0 0
          %1628 = vmatprep.subr.bf16.mxu0 0
          %1629 = vmatpush1.bf16.msra.mxu0 0
          %1630 = vmatprep.mubr.bf16.mxu0 0
          %1631 = vmatmul.mubr.bf16.gmra.mrb[0].mxu0 %v1510
          %v1632 = vpop.f32.mrb[0].mxu0
          %v1633 = vadd.f32 0.0, %v1632
          %v1634 = vpop.f32.mrb[0].mxu0
          %v1635 = vpop.f32.mrb[0].mxu0
          %v1636 = vadd.f32 0.0, %v1635
          %v1637 = vpop.f32.mrb[0].mxu0
          %1638 = vmatprep.mubr.bf16.mxu0 0
          %1639 = vmatmul.mubr.bf16.gmra.mrb[0].mxu0 %v1511
          %v1640 = vpop.f32.mrb[0].mxu0
          %v1641 = vadd.f32 0.0, %v1640
          %v1642 = vpop.f32.mrb[0].mxu0
          %v1643 = vpop.f32.mrb[0].mxu0
          %v1644 = vadd.f32 0.0, %v1643
          %v1645 = vpop.f32.mrb[0].mxu0
          %1646 = vmatprep.mubr.bf16.mxu0 0
          %1647 = vmatmul.mubr.bf16.gmra.mrb[0].mxu0 %v1512
          %v1648 = vpop.f32.mrb[0].mxu0
          %v1649 = vadd.f32 0.0, %v1648
          %v1650 = vpop.f32.mrb[0].mxu0
          %v1651 = vpop.f32.mrb[0].mxu0
          %v1652 = vadd.f32 0.0, %v1651
          %v1653 = vpop.f32.mrb[0].mxu0
          %1654 = vmatprep.mubr.bf16.mxu0 0
          %1655 = vmatmul.mubr.bf16.gmra.mrb[0].mxu0 %v1513
          %v1656 = vpop.f32.mrb[0].mxu0
          %v1657 = vadd.f32 0.0, %v1656
          %v1658 = vpop.f32.mrb[0].mxu0
          %v1659 = vpop.f32.mrb[0].mxu0
          %v1660 = vadd.f32 0.0, %v1659
          %v1661 = vpop.f32.mrb[0].mxu0
          %1662 = vmatprep.mubr.bf16.mxu0 0
          %1663 = vmatmul.mubr.bf16.gmra.mrb[0].mxu0 %v1514
          %v1664 = vpop.f32.mrb[0].mxu0
          %v1665 = vadd.f32 0.0, %v1664
          %v1666 = vpop.f32.mrb[0].mxu0
          %v1667 = vpop.f32.mrb[0].mxu0
          %v1668 = vadd.f32 0.0, %v1667
          %v1669 = vpop.f32.mrb[0].mxu0
          %1670 = vmatprep.mubr.bf16.mxu0 0
          %1671 = vmatmul.mubr.bf16.gmra.mrb[0].mxu0 %v1515
          %v1672 = vpop.f32.mrb[0].mxu0
          %v1673 = vadd.f32 0.0, %v1672
          %v1674 = vpop.f32.mrb[0].mxu0
          %v1675 = vpop.f32.mrb[0].mxu0
          %v1676 = vadd.f32 0.0, %v1675
          %v1677 = vpop.f32.mrb[0].mxu0
          %1678 = vmatprep.mubr.bf16.mxu0 0
          %1679 = vmatmul.mubr.bf16.gmra.mrb[0].mxu0 %v1516
          %v1680 = vpop.f32.mrb[0].mxu0
          %v1681 = vadd.f32 0.0, %v1680
          %v1682 = vpop.f32.mrb[0].mxu0
          %v1683 = vpop.f32.mrb[0].mxu0
          %v1684 = vadd.f32 0.0, %v1683
          %v1685 = vpop.f32.mrb[0].mxu0
          %1686 = vmatprep.mubr.bf16.mxu0 0
          %1687 = vmatmul.mubr.bf16.gmra.mrb[0].mxu0 %v1517
          %v1688 = vpop.f32.mrb[0].mxu0
          %v1689 = vadd.f32 0.0, %v1688
          %v1690 = vpop.f32.mrb[0].mxu0
          %v1691 = vpop.f32.mrb[0].mxu0
          %v1692 = vadd.f32 0.0, %v1691
          %v1693 = vpop.f32.mrb[0].mxu0
          %1694 = vdwg.mxu0
          %v1695 = vadd.f32 %v1518, %v1633
          %v1696 = vadd.f32 %v1519, %v1636
          %v1697 = vadd.f32 %v1520, %v1641
          %v1698 = vadd.f32 %v1521, %v1644
          %v1699 = vadd.f32 %v1522, %v1649
          %v1700 = vadd.f32 %v1523, %v1652
          %v1701 = vadd.f32 %v1524, %v1657
          %v1702 = vadd.f32 %v1525, %v1660
          %v1703 = vadd.f32 %v1526, %v1665
          %v1704 = vadd.f32 %v1527, %v1668
          %v1705 = vadd.f32 %v1528, %v1673
          %v1706 = vadd.f32 %v1529, %v1676
          %v1707 = vadd.f32 %v1530, %v1681
          %v1708 = vadd.f32 %v1531, %v1684
          %v1709 = vadd.f32 %v1532, %v1689
          %v1710 = vadd.f32 %v1533, %v1692
          %v1711 = vld [vmem:[%s9] sm:$0x1]
          %v1713 = vlaneseq
          %v1714 = vshrl.u32 %v1713, 7
          %v1715 = vsub.s32 0, %v1714
          %v1716 = vrot.slane %v1711, %v1715
          %v1718 = vadd.f32 %v1695, %v1716
          %v1719 = vadd.f32 %v1696, %v1716
          %v1720 = vadd.f32 %v1697, %v1716
          %v1721 = vadd.f32 %v1698, %v1716
          %v1722 = vadd.f32 %v1699, %v1716
          %v1723 = vadd.f32 %v1700, %v1716
          %v1724 = vadd.f32 %v1701, %v1716
          %v1725 = vadd.f32 %v1702, %v1716
          %v1726 = vadd.f32 %v1703, %v1716
          %v1727 = vadd.f32 %v1704, %v1716
          %v1728 = vadd.f32 %v1705, %v1716
          %v1729 = vadd.f32 %v1706, %v1716
          %v1730 = vadd.f32 %v1707, %v1716
          %v1731 = vadd.f32 %v1708, %v1716
          %v1732 = vadd.f32 %v1709, %v1716
          %v1733 = vadd.f32 %v1710, %v1716
          %v1734 = vmax.f32 %v1718, 0.0
          %v1735 = vmax.f32 %v1719, 0.0
          %v1736 = vmax.f32 %v1720, 0.0
          %v1737 = vmax.f32 %v1721, 0.0
          %v1738 = vmax.f32 %v1722, 0.0
          %v1739 = vmax.f32 %v1723, 0.0
          %v1740 = vmax.f32 %v1724, 0.0
          %v1741 = vmax.f32 %v1725, 0.0
          %v1742 = vmax.f32 %v1726, 0.0
          %v1743 = vmax.f32 %v1727, 0.0
          %v1744 = vmax.f32 %v1728, 0.0
          %v1745 = vmax.f32 %v1729, 0.0
          %v1746 = vmax.f32 %v1730, 0.0
          %v1747 = vmax.f32 %v1731, 0.0
          %v1748 = vmax.f32 %v1732, 0.0
          %v1749 = vmax.f32 %v1733, 0.0
          %1750 = vst [vmem:[%s522] sm:$0xff] %v1734
          %1751 = vst [vmem:[%s522 + $0x8] sm:$0xff] %v1735
          %1752 = vst [vmem:[%s522 + $0x10] sm:$0xff] %v1736
          %1753 = vst [vmem:[%s522 + $0x18] sm:$0xff] %v1737
          %1754 = vst [vmem:[%s522 + $0x20] sm:$0xff] %v1738
          %1755 = vst [vmem:[%s522 + $0x28] sm:$0xff] %v1739
          %1756 = vst [vmem:[%s522 + $0x30] sm:$0xff] %v1740
          %1757 = vst [vmem:[%s522 + $0x38] sm:$0xff] %v1741
          %1758 = vst [vmem:[%s522 + $0x40] sm:$0xff] %v1742
          %1759 = vst [vmem:[%s522 + $0x48] sm:$0xff] %v1743
          %1760 = vst [vmem:[%s522 + $0x50] sm:$0xff] %v1744
          %1761 = vst [vmem:[%s522 + $0x58] sm:$0xff] %v1745
          %1762 = vst [vmem:[%s522 + $0x60] sm:$0xff] %v1746
          %1763 = vst [vmem:[%s522 + $0x68] sm:$0xff] %v1747
          %1764 = vst [vmem:[%s522 + $0x70] sm:$0xff] %v1748
          %1765 = vst [vmem:[%s522 + $0x78] sm:$0xff] %v1749
        $region84: #{tpu_custom_call.1} parent=51 // pred_fallthru
          _
        %s1766 = sand.u32 %s282, 1
        %s1767 = scalar_lea.sflag [#allocation9], %s1766
        %s1768 = sand.u32 %s282, 1
        %s1769 = smul.addr %s1768, 128
        %s1770 = scalar_lea.vmem [#allocation16], %s1769
        // Predicated region
        $region85: #{tpu_custom_call.1} parent=51 // pred_check
          %p1771 = pneg %p292
        $region86: #{tpu_custom_call.1} parent=51 // pred_check_branch
          %1773 = sbr.rel (%p1771) target = $region88
        $region87: #{tpu_custom_call.1} parent=51 // pred_region
          %s1774 = smul.u32 16, %s43
          %s1776 = ssub.s32 2048, 2048
          %1777 = vsyncadd %s1767, %s1776
          %s1778 = smul.addr %s1774, 128
          %s1779 = scalar_lea.hbm %s10, %s1778
          %s1780 = sshll.u32 %s1770, 4
          %s1781 = int_to_ptr.vmem [resolvable:$true] %s1780
          %1786 = dma.vmem_to_hbm [thread:$0]  %s1781, 2048, %s1779, %s1767, 128, 128, 8
        $region88: #{tpu_custom_call.1} parent=51 // pred_fallthru
          _
      $region52: #{tpu_custom_call.1} parent=5 // pred_fallthru
        _
      %p1787 = scmp.le.s32.totalorder 2, %s34
      // Predicated region
      $region89: #{tpu_custom_call.1} parent=5 // pred_check
        %p1788 = pneg %p1787
      $region90: #{tpu_custom_call.1} parent=5 // pred_check_branch
        %1790 = sbr.rel (%p1788) target = $region92
      $region91: #{tpu_custom_call.1} parent=5 // pred_region
        %s1791 = ssub.s32 %s34, 2
        // Predicated region
        $region93: #{tpu_custom_call.1} parent=91 // pred_check
          %p1792 = pneg %p298
        $region94: #{tpu_custom_call.1} parent=91 // pred_check_branch
          %1794 = sbr.rel (%p1792) target = $region96
        $region95: #{tpu_custom_call.1} parent=91 // pred_region
          %s1795 = sand.u32 %s283, 1
          %s1796 = scalar_lea.sflag [#allocation9], %s1795
          %s1797 = sand.u32 %s283, 1
          %s1798 = smul.addr %s1797, 128
          %s1799 = scalar_lea.vmem [#allocation16], %s1798
          %1800 = dma.done %s1796, 2048
        $region96: #{tpu_custom_call.1} parent=91 // pred_fallthru
          _
      $region92: #{tpu_custom_call.1} parent=5 // pred_fallthru
        _
    $region6: #{tpu_custom_call.1} parent=1 // loop_footer
      %s38 = sadd.s32 1, %s34
    $region7: #{tpu_custom_call.1} parent=1 // loop_footer_branch
      %33 = sbr.rel target = $region3
    $region8: #{tpu_custom_call.1} parent=1 // loop_exit
      _
    %1801 = vsyncpa [#allocation8], 1
    %s1802 = scalar_lea.sflag [#allocation8], 1
    %1803 = vsyncpa %s1802, 1
    %1804 = vsyncpa [#allocation11], 1
    %s1805 = scalar_lea.sflag [#allocation11], 1
    %1806 = vsyncpa %s1805, 1
    %1807 = vsyncpa [#allocation14], 1
    %1808 = vsyncpa [#allocation9], 1
    %s1809 = scalar_lea.sflag [#allocation9], 1
    %1810 = vsyncpa %s1809, 1

</llo_original>
